<compile_context>
chip_gen: v7x
topology: tpu7x:2x2x1
jax: 0.10.0
libtpu: 0.0.40
codegen_flags: <defaults>
</compile_context>

<pallas_src>
import jax
import jax.numpy as jnp
from jax import lax
from jax.experimental import pallas as pl
from jax.experimental.pallas import tpu as pltpu

IMG_FEATURES = 32
HIDDEN = 64          # LSTM hidden size (PyTorch: LSTM(259, 64))
PRE = 256            # precurrent width


# ---------------------------------------------------------------------------
# Kernel A: vision stand-in + precurrent MLP + LSTM input projection.
# Gridded over N = batch*seq rows; weights stay resident in VMEM.
# ---------------------------------------------------------------------------
def feature_kernel(xr_ref, xl_ref, a_ref,
                   wv_ref, bv_ref,
                   w1r_ref, w1l_ref, b1_ref,
                   w2_ref, b2_ref,
                   wih_h_ref, wih_a_ref, bih_ref,
                   xproj_ref):
    bf16 = jnp.bfloat16
    f32 = jnp.float32

    # VisionInput stand-in (global-avg-pool + Linear + ReLU).  The pooling is
    # pre-folded into wv_ref (= repeat(wv, H*W) / (H*W)) so this is a single
    # large-K bf16 MXU matmul per eye — no cross-lane mean, no tiny-K matmul.
    # TODO(synk): VisionInput is not defined in the provided source; this
    # stand-in matches the in-script JAX reference, not the real module.
    fr = jnp.maximum(
        jnp.dot(xr_ref[...], wv_ref[...], preferred_element_type=f32) + bv_ref[...], 0.0)
    fl = jnp.maximum(
        jnp.dot(xl_ref[...], wv_ref[...], preferred_element_type=f32) + bv_ref[...], 0.0)

    # precurrent1 on cat([right, left]) with the concat folded into split weights.
    h1 = jnp.tanh(
        jnp.dot(fr.astype(bf16), w1r_ref[...], preferred_element_type=f32)
        + jnp.dot(fl.astype(bf16), w1l_ref[...], preferred_element_type=f32)
        + b1_ref[...])
    h2 = jnp.tanh(
        jnp.dot(h1.astype(bf16), w2_ref[...], preferred_element_type=f32) + b2_ref[...])

    # LSTM input projection x @ W_ih^T + (b_ih + b_hh).  The 3-wide acc half of
    # the 259-wide LSTM input is done as VPU broadcast FMAs (off the MXU).
    a = a_ref[...]                                                  # (tile_n, 3) f32
    acc_term = (a[:, 0:1] * wih_a_ref[0:1, :]
                + a[:, 1:2] * wih_a_ref[1:2, :]
                + a[:, 2:3] * wih_a_ref[2:3, :])                    # (tile_n, 4H)
    xproj_ref[...] = (
        jnp.dot(h2.astype(bf16), wih_h_ref[...], preferred_element_type=f32)
        + acc_term + bih_ref[...])


# ---------------------------------------------------------------------------
# Kernel B: sequential LSTM recurrence, fused with the hoisted speed_out head.
# ---------------------------------------------------------------------------
def lstm_kernel(xproj_ref, whh_ref, wout_ref, bout_ref, out_ref, h_all_ref):
    S, B, _ = xproj_ref.shape
    H = whh_ref.shape[0]

    h = jnp.zeros((B, H), jnp.float32)
    c = jnp.zeros((B, H), jnp.float32)

    # Fully unrolled (S is small and static) so the scheduler can overlap the
    # next step's W_hh matmul with the current step's elementwise work.
    # TODO(synk): for long sequences switch to lax.fori_loop(..., unroll=k).
    for t in range(S):
        gates = xproj_ref[t] + jnp.dot(h, whh_ref[...],
                                       preferred_element_type=jnp.float32)   # (B, 4H)
        sg = jax.nn.sigmoid(gates)          # whole-vreg EUP op
        th = jnp.tanh(gates)                # whole-vreg EUP op
        i = sg[:, 0 * H:1 * H]
        f = sg[:, 1 * H:2 * H]
        g = th[:, 2 * H:3 * H]
        o = sg[:, 3 * H:4 * H]
        c = f * c + i * g
        h = o * jnp.tanh(c)
        h_all_ref[t] = h                    # VMEM scratch only; no per-step HBM store

    # speed_out hoisted out of the recurrence: one bulk projection + tanh and a
    # single store of the whole (S, B) output (no per-step (B, 1) masked store).
    y = jnp.sum(h_all_ref[...] * wout_ref[...], axis=-1) + bout_ref[0]        # (S, B)
    out_ref[...] = jnp.tanh(y)
    # TODO(synk): for large B on v7x, grid the recurrence over batch tiles
    # (dimension_semantics=("parallel",)) to use both TensorCores.


# ---------------------------------------------------------------------------
# Wrapper.
# ---------------------------------------------------------------------------
def _choose_tile_n(n_rows, chw):
    # 2 image inputs x 2 pipeline buffers of bf16 rows, budgeted to ~16 MiB so
    # the whole call stays well inside v7x's 64 MiB VMEM (128 MiB on v5e/v6e).
    budget = 16 * 1024 * 1024
    t = budget // (2 * 2 * chw * 2)
    t = max(16, min(512, (t // 16) * 16))
    if n_rows <= t:
        return n_rows
    return t


def speed_model_forward(prep, imgs_l, imgs_r, acc_vectors):
    B, S, C, HP, WP = imgs_l.shape
    N = B * S
    CHW = C * HP * WP
    F = IMG_FEATURES
    G = 4 * HIDDEN

    # Layout plumbing only: flatten spatial dims onto the lane axis, bf16 for
    # the MXU / halved DMA bytes.
    xr = imgs_r.reshape(N, CHW).astype(jnp.bfloat16)
    xl = imgs_l.reshape(N, CHW).astype(jnp.bfloat16)
    acc_flat = acc_vectors.reshape(N, 3).astype(jnp.float32)
    # acc_feats Linear(3,3)+tanh is tiny -> keep it in XLA, off the MXU.
    a_feats = jnp.tanh(acc_flat @ prep['wa'] + prep['ba'])

    tile_n = _choose_tile_n(N, CHW)
    n_pad = pl.cdiv(N, tile_n) * tile_n
    if n_pad != N:
        pad = ((0, n_pad - N), (0, 0))
        xr = jnp.pad(xr, pad)
        xl = jnp.pad(xl, pad)
        a_feats = jnp.pad(a_feats, pad)
    grid_n = n_pad // tile_n

    def row_spec(lane):
        return pl.BlockSpec((tile_n, lane), lambda i: (i, 0))

    def weight_spec(shape):
        return pl.BlockSpec(shape, lambda i: (0, 0))

    feat_cost = pl.CostEstimate(
        flops=2 * n_pad * (2 * CHW * F + 2 * F * PRE + PRE * PRE + (PRE + 3) * G),
        transcendentals=n_pad * 2 * PRE,
        bytes_accessed=(2 * n_pad * CHW * 2 + n_pad * 3 * 4 + n_pad * G * 4
                        + 2 * (CHW * F + 2 * F * PRE + PRE * PRE + PRE * G)),
    )

    xproj = pl.pallas_call(
        feature_kernel,
        out_shape=jax.ShapeDtypeStruct((n_pad, G), jnp.float32),
        grid=(grid_n,),
        in_specs=[
            row_spec(CHW),                       # right-eye images, flattened
            row_spec(CHW),                       # left-eye images, flattened
            row_spec(3),                         # tanh(acc_feats)
            weight_spec((CHW, F)),               # pool-folded vision weight
            weight_spec((1, F)),
            weight_spec((F, PRE)),               # precurrent1, right half
            weight_spec((F, PRE)),               # precurrent1, left half
            weight_spec((1, PRE)),
            weight_spec((PRE, PRE)),             # precurrent2
            weight_spec((1, PRE)),
            weight_spec((PRE, G)),               # W_ih^T (h2 part)
            weight_spec((3, G)),                 # W_ih^T (acc part)
            weight_spec((1, G)),                 # b_ih + b_hh
        ],
        out_specs=pl.BlockSpec((tile_n, G), lambda i: (i, 0)),
        compiler_params=pltpu.CompilerParams(
            dimension_semantics=("parallel",),
            vmem_limit_bytes=64 * 1024 * 1024),
        cost_estimate=feat_cost,
    )(xr, xl, a_feats,
      prep['wv_spatial'], prep['bv'],
      prep['w1_r'], prep['w1_l'], prep['b1'],
      prep['w2'], prep['b2'],
      prep['wih_h'], prep['wih_a'], prep['bih'])

    # (N, 4H) -> time-major (S, B, 4H); tiny relative to the image DMA volume.
    xproj_sb = xproj[:N].reshape(B, S, G).transpose(1, 0, 2)

    lstm_cost = pl.CostEstimate(
        flops=2 * S * B * HIDDEN * G + 14 * S * B * HIDDEN,
        transcendentals=S * B * (2 * G + HIDDEN) + S * B,
        bytes_accessed=S * B * G * 4 + S * B * 4 + HIDDEN * G * 4,
    )

    out_sb = pl.pallas_call(
        lstm_kernel,
        out_shape=jax.ShapeDtypeStruct((S, B), jnp.float32),
        in_specs=[
            pl.BlockSpec(memory_space=pltpu.MemorySpace.VMEM),   # xproj (S, B, 4H)
            pl.BlockSpec(memory_space=pltpu.MemorySpace.VMEM),   # W_hh^T
            pl.BlockSpec(memory_space=pltpu.MemorySpace.VMEM),   # speed_out weight (1, H)
            pl.BlockSpec(memory_space=pltpu.MemorySpace.SMEM),   # speed_out bias scalar
        ],
        out_specs=pl.BlockSpec(memory_space=pltpu.MemorySpace.VMEM),
        scratch_shapes=[pltpu.VMEM((S, B, HIDDEN), jnp.float32)],
        compiler_params=pltpu.CompilerParams(vmem_limit_bytes=64 * 1024 * 1024),
        cost_estimate=lstm_cost,
    )(xproj_sb, prep['whh'], prep['wout_row'], prep['bout'])

    return out_sb.T                                              # (B, S)


# ---------------------------------------------------------------------------
# Parameters.
# ---------------------------------------------------------------------------
def init_params(key, channels, img_features=IMG_FEATURES, hidden=HIDDEN):
    ks = jax.random.split(key, 14)

    def w(k, shape, scale=0.1):
        return jax.random.normal(k, shape, jnp.float32) * scale

    return dict(
        wv=w(ks[0], (channels, img_features)),         # VisionInput stand-in
        bv=w(ks[1], (1, img_features)),
        w1=w(ks[2], (2 * img_features, PRE)),           # precurrent1
        b1=w(ks[3], (1, PRE)),
        w2=w(ks[4], (PRE, PRE)),                        # precurrent2
        b2=w(ks[5], (1, PRE)),
        wa=w(ks[6], (3, 3)),                            # acc_feats
        ba=w(ks[7], (1, 3)),
        wih_h=w(ks[8], (PRE, 4 * hidden)),              # LSTM W_ih^T (h2 half)
        wih_a=w(ks[9], (3, 4 * hidden)),                # LSTM W_ih^T (acc half)
        bih=w(ks[10], (1, 4 * hidden)),                 # b_ih + b_hh folded
        whh=w(ks[11], (hidden, 4 * hidden)),            # LSTM W_hh^T
        wout=w(ks[12], (hidden, 1)),                    # speed_out
        bout=w(ks[13], (1, 1)),
    )


def prepare_params(params, hw):
    """Kernel-ready weights: pooling folded into the vision weight, precurrent1
    split into right/left halves, bf16 for the large MXU operands."""
    bf16 = jnp.bfloat16
    f32 = jnp.float32
    F = params['wv'].shape[1]
    wv_spatial = (jnp.repeat(params['wv'], hw, axis=0) / hw).astype(bf16)   # (C*H*W, F)
    return dict(
        wv_spatial=wv_spatial,
        bv=params['bv'].astype(f32),
        w1_r=params['w1'][:F].astype(bf16),      # acts on right-eye features
        w1_l=params['w1'][F:].astype(bf16),      # acts on left-eye features
        b1=params['b1'].astype(f32),
        w2=params['w2'].astype(bf16),
        b2=params['b2'].astype(f32),
        wih_h=params['wih_h'].astype(bf16),
        wih_a=params['wih_a'].astype(f32),
        bih=params['bih'].astype(f32),
        wa=params['wa'].astype(f32),
        ba=params['ba'].astype(f32),
        whh=params['whh'].astype(f32),           # recurrence kept in f32
        wout_row=params['wout'].T.astype(f32),   # (1, H) lane-dense
        bout=params['bout'].reshape(-1).astype(f32),   # (1,) scalar for SMEM
    )


# ---------------------------------------------------------------------------
# Pure-JAX reference mirroring the kernel's bf16 operand rounding (same math
# as SpeedModel.forward with the vision stand-in) for a tight correctness check.
# ---------------------------------------------------------------------------
def reference_forward(prep, imgs_l, imgs_r, acc_vectors):
    B, S, C, HP, WP = imgs_l.shape
    N = B * S
    f32 = jnp.float32
    q = lambda x: x.astype(jnp.bfloat16).astype(f32)

    xr = q(imgs_r.reshape(N, -1))
    xl = q(imgs_l.reshape(N, -1))
    wv = prep['wv_spatial'].astype(f32)
    fr = jax.nn.relu(xr @ wv + prep['bv'])
    fl = jax.nn.relu(xl @ wv + prep['bv'])
    h1 = jnp.tanh(q(fr) @ prep['w1_r'].astype(f32)
                  + q(fl) @ prep['w1_l'].astype(f32) + prep['b1'])
    h2 = jnp.tanh(q(h1) @ prep['w2'].astype(f32) + prep['b2'])
    a = jnp.tanh(acc_vectors.reshape(N, 3).astype(f32) @ prep['wa'] + prep['ba'])
    acc_term = (a[:, 0:1] * prep['wih_a'][0:1, :]
                + a[:, 1:2] * prep['wih_a'][1:2, :]
                + a[:, 2:3] * prep['wih_a'][2:3, :])
    xproj = q(h2) @ prep['wih_h'].astype(f32) + acc_term + prep['bih']      # (N, 4H)
    xproj = xproj.reshape(B, S, 4 * HIDDEN).transpose(1, 0, 2)              # (S, B, 4H)

    Hd = HIDDEN

    def step(carry, x_t):
        h, c = carry
        gates = x_t + h @ prep['whh']
        i = jax.nn.sigmoid(gates[:, :Hd])
        f = jax.nn.sigmoid(gates[:, Hd:2 * Hd])
        g = jnp.tanh(gates[:, 2 * Hd:3 * Hd])
        o = jax.nn.sigmoid(gates[:, 3 * Hd:4 * Hd])
        c = f * c + i * g
        h = o * jnp.tanh(c)
        return (h, c), h

    (_, _), hs = lax.scan(step,
                          (jnp.zeros((B, Hd), f32), jnp.zeros((B, Hd), f32)),
                          xproj)
    y = jnp.sum(hs * prep['wout_row'], axis=-1) + prep['bout'][0]           # (S, B)
    return jnp.tanh(y).T                                                    # (B, S)


if __name__ == "__main__":
    key = jax.random.PRNGKey(0)
    k_l, k_r, k_a, k_p = jax.random.split(key, 4)

    B, S, C, HP, WP = 2, 8, 4, 16, 16
    imgs_l = jax.random.normal(k_l, (B, S, C, HP, WP), jnp.float32)
    imgs_r = jax.random.normal(k_r, (B, S, C, HP, WP), jnp.float32)
    acc_vectors = jax.random.normal(k_a, (B, S, 3), jnp.float32)

    params = init_params(k_p, C)
    prep = prepare_params(params, HP * WP)

    out = speed_model_forward(prep, imgs_l, imgs_r, acc_vectors)
    out = jax.block_until_ready(out)

    ref = reference_forward(prep, imgs_l, imgs_r, acc_vectors)
    assert out.shape == (B, S), out.shape
    max_err = float(jnp.max(jnp.abs(out - ref)))
    assert jnp.allclose(out, ref, atol=5e-3, rtol=5e-3), (
        f"mismatch vs JAX reference, max abs err={max_err}")

    print("KERNEL_OK")
</pallas_src>

<mosaic_0001>
module attributes {stable_mosaic.version = 11 : i64} {
  func.func @feature_kernel(%arg0: i32, %arg1: memref<16x1024xbf16, #tpu.memory_space<vmem>>, %arg2: memref<16x1024xbf16, #tpu.memory_space<vmem>>, %arg3: memref<16x3xf32, #tpu.memory_space<vmem>>, %arg4: memref<1024x32xbf16, #tpu.memory_space<vmem>>, %arg5: memref<1x32xf32, #tpu.memory_space<vmem>>, %arg6: memref<32x256xbf16, #tpu.memory_space<vmem>>, %arg7: memref<32x256xbf16, #tpu.memory_space<vmem>>, %arg8: memref<1x256xf32, #tpu.memory_space<vmem>>, %arg9: memref<256x256xbf16, #tpu.memory_space<vmem>>, %arg10: memref<1x256xf32, #tpu.memory_space<vmem>>, %arg11: memref<256x256xbf16, #tpu.memory_space<vmem>>, %arg12: memref<3x256xf32, #tpu.memory_space<vmem>>, %arg13: memref<1x256xf32, #tpu.memory_space<vmem>>, %arg14: memref<16x256xf32, #tpu.memory_space<vmem>>) attributes {dimension_semantics = [#tpu.dimension_semantics<parallel>], iteration_bounds = array<i64: 1>, scalar_prefetch = 0 : i64, scratch_operands = 0 : i64, tpu.core_type = #tpu.core_type<tc>, window_params = [{transform_indices = @transform_0, window_bounds = array<i64: 16, 1024>}, {transform_indices = @transform_1, window_bounds = array<i64: 16, 1024>}, {transform_indices = @transform_2, window_bounds = array<i64: 16, 3>}, {pipeline_mode = #tpu.pipeline_mode<synchronous>, transform_indices = @transform_3, window_bounds = array<i64: 1024, 32>}, {pipeline_mode = #tpu.pipeline_mode<synchronous>, transform_indices = @transform_4, window_bounds = array<i64: 1, 32>}, {pipeline_mode = #tpu.pipeline_mode<synchronous>, transform_indices = @transform_5, window_bounds = array<i64: 32, 256>}, {pipeline_mode = #tpu.pipeline_mode<synchronous>, transform_indices = @transform_6, window_bounds = array<i64: 32, 256>}, {pipeline_mode = #tpu.pipeline_mode<synchronous>, transform_indices = @transform_7, window_bounds = array<i64: 1, 256>}, {pipeline_mode = #tpu.pipeline_mode<synchronous>, transform_indices = @transform_8, window_bounds = array<i64: 256, 256>}, {pipeline_mode = #tpu.pipeline_mode<synchronous>, transform_indices = @transform_9, window_bounds = array<i64: 1, 256>}, {pipeline_mode = #tpu.pipeline_mode<synchronous>, transform_indices = @transform_10, window_bounds = array<i64: 256, 256>}, {pipeline_mode = #tpu.pipeline_mode<synchronous>, transform_indices = @transform_11, window_bounds = array<i64: 3, 256>}, {pipeline_mode = #tpu.pipeline_mode<synchronous>, transform_indices = @transform_12, window_bounds = array<i64: 1, 256>}, {transform_indices = @transform_13, window_bounds = array<i64: 16, 256>}]} {
    %c0 = arith.constant 0 : index
    %c0_0 = arith.constant 0 : index
    %0 = vector.load %arg1[%c0, %c0_0] : memref<16x1024xbf16, #tpu.memory_space<vmem>>, vector<16x1024xbf16>
    %c0_1 = arith.constant 0 : index
    %c0_2 = arith.constant 0 : index
    %1 = vector.load %arg4[%c0_1, %c0_2] : memref<1024x32xbf16, #tpu.memory_space<vmem>>, vector<1024x32xbf16>
    %cst = arith.constant dense<0.000000e+00> : vector<16x32xf32>
    %2 = tpu.matmul %0, %1, %cst {dimension_numbers = #tpu.dot_dimension_numbers<[1], [0], [0], [1], [0, 0, 1, 1], [], []>} : vector<16x1024xbf16>, vector<1024x32xbf16>, vector<16x32xf32> -> vector<16x32xf32>
    %c0_3 = arith.constant 0 : index
    %c0_4 = arith.constant 0 : index
    %3 = vector.load %arg5[%c0_3, %c0_4] : memref<1x32xf32, #tpu.memory_space<vmem>>, vector<1x32xf32>
    %4 = vector.broadcast %3 : vector<1x32xf32> to vector<16x32xf32>
    %5 = arith.addf %2, %4 : vector<16x32xf32>
    %cst_5 = arith.constant 0.000000e+00 : f32
    %6 = vector.broadcast %cst_5 : f32 to vector<16x32xf32>
    %7 = arith.maximumf %5, %6 : vector<16x32xf32>
    %c0_6 = arith.constant 0 : index
    %c0_7 = arith.constant 0 : index
    %8 = vector.load %arg2[%c0_6, %c0_7] : memref<16x1024xbf16, #tpu.memory_space<vmem>>, vector<16x1024xbf16>
    %c0_8 = arith.constant 0 : index
    %c0_9 = arith.constant 0 : index
    %9 = vector.load %arg4[%c0_8, %c0_9] : memref<1024x32xbf16, #tpu.memory_space<vmem>>, vector<1024x32xbf16>
    %cst_10 = arith.constant dense<0.000000e+00> : vector<16x32xf32>
    %10 = tpu.matmul %8, %9, %cst_10 {dimension_numbers = #tpu.dot_dimension_numbers<[1], [0], [0], [1], [0, 0, 1, 1], [], []>} : vector<16x1024xbf16>, vector<1024x32xbf16>, vector<16x32xf32> -> vector<16x32xf32>
    %c0_11 = arith.constant 0 : index
    %c0_12 = arith.constant 0 : index
    %11 = vector.load %arg5[%c0_11, %c0_12] : memref<1x32xf32, #tpu.memory_space<vmem>>, vector<1x32xf32>
    %12 = vector.broadcast %11 : vector<1x32xf32> to vector<16x32xf32>
    %13 = arith.addf %10, %12 : vector<16x32xf32>
    %cst_13 = arith.constant 0.000000e+00 : f32
    %14 = vector.broadcast %cst_13 : f32 to vector<16x32xf32>
    %15 = arith.maximumf %13, %14 : vector<16x32xf32>
    %16 = arith.truncf %7 : vector<16x32xf32> to vector<16x32xbf16>
    %c0_14 = arith.constant 0 : index
    %c0_15 = arith.constant 0 : index
    %17 = vector.load %arg6[%c0_14, %c0_15] : memref<32x256xbf16, #tpu.memory_space<vmem>>, vector<32x256xbf16>
    %cst_16 = arith.constant dense<0.000000e+00> : vector<16x256xf32>
    %18 = tpu.matmul %16, %17, %cst_16 {dimension_numbers = #tpu.dot_dimension_numbers<[1], [0], [0], [1], [0, 0, 1, 1], [], []>} : vector<16x32xbf16>, vector<32x256xbf16>, vector<16x256xf32> -> vector<16x256xf32>
    %19 = arith.truncf %15 : vector<16x32xf32> to vector<16x32xbf16>
    %c0_17 = arith.constant 0 : index
    %c0_18 = arith.constant 0 : index
    %20 = vector.load %arg7[%c0_17, %c0_18] : memref<32x256xbf16, #tpu.memory_space<vmem>>, vector<32x256xbf16>
    %cst_19 = arith.constant dense<0.000000e+00> : vector<16x256xf32>
    %21 = tpu.matmul %19, %20, %cst_19 {dimension_numbers = #tpu.dot_dimension_numbers<[1], [0], [0], [1], [0, 0, 1, 1], [], []>} : vector<16x32xbf16>, vector<32x256xbf16>, vector<16x256xf32> -> vector<16x256xf32>
    %22 = arith.addf %18, %21 : vector<16x256xf32>
    %c0_20 = arith.constant 0 : index
    %c0_21 = arith.constant 0 : index
    %23 = vector.load %arg8[%c0_20, %c0_21] : memref<1x256xf32, #tpu.memory_space<vmem>>, vector<1x256xf32>
    %24 = vector.broadcast %23 : vector<1x256xf32> to vector<16x256xf32>
    %25 = arith.addf %22, %24 : vector<16x256xf32>
    %26 = math.tanh %25 : vector<16x256xf32>
    %27 = arith.truncf %26 : vector<16x256xf32> to vector<16x256xbf16>
    %c0_22 = arith.constant 0 : index
    %c0_23 = arith.constant 0 : index
    %28 = vector.load %arg9[%c0_22, %c0_23] : memref<256x256xbf16, #tpu.memory_space<vmem>>, vector<256x256xbf16>
    %cst_24 = arith.constant dense<0.000000e+00> : vector<16x256xf32>
    %29 = tpu.matmul %27, %28, %cst_24 {dimension_numbers = #tpu.dot_dimension_numbers<[1], [0], [0], [1], [0, 0, 1, 1], [], []>} : vector<16x256xbf16>, vector<256x256xbf16>, vector<16x256xf32> -> vector<16x256xf32>
    %c0_25 = arith.constant 0 : index
    %c0_26 = arith.constant 0 : index
    %30 = vector.load %arg10[%c0_25, %c0_26] : memref<1x256xf32, #tpu.memory_space<vmem>>, vector<1x256xf32>
    %31 = vector.broadcast %30 : vector<1x256xf32> to vector<16x256xf32>
    %32 = arith.addf %29, %31 : vector<16x256xf32>
    %33 = math.tanh %32 : vector<16x256xf32>
    %c0_27 = arith.constant 0 : index
    %c0_28 = arith.constant 0 : index
    %34 = vector.load %arg3[%c0_27, %c0_28] : memref<16x3xf32, #tpu.memory_space<vmem>>, vector<16x3xf32>
    %35 = vector.extract_strided_slice %34 {offsets = [0, 0], sizes = [16, 1], strides = [1, 1]} : vector<16x3xf32> to vector<16x1xf32>
    %c0_29 = arith.constant 0 : index
    %c0_30 = arith.constant 0 : index
    %36 = vector.load %arg12[%c0_29, %c0_30] : memref<3x256xf32, #tpu.memory_space<vmem>>, vector<1x256xf32>
    %37 = vector.broadcast %35 : vector<16x1xf32> to vector<16x256xf32>
    %38 = vector.broadcast %36 : vector<1x256xf32> to vector<16x256xf32>
    %39 = arith.mulf %37, %38 : vector<16x256xf32>
    %40 = vector.extract_strided_slice %34 {offsets = [0, 1], sizes = [16, 1], strides = [1, 1]} : vector<16x3xf32> to vector<16x1xf32>
    %c1 = arith.constant 1 : index
    %c0_31 = arith.constant 0 : index
    %41 = vector.load %arg12[%c1, %c0_31] : memref<3x256xf32, #tpu.memory_space<vmem>>, vector<1x256xf32>
    %42 = vector.broadcast %40 : vector<16x1xf32> to vector<16x256xf32>
    %43 = vector.broadcast %41 : vector<1x256xf32> to vector<16x256xf32>
    %44 = arith.mulf %42, %43 : vector<16x256xf32>
    %45 = arith.addf %39, %44 : vector<16x256xf32>
    %46 = vector.extract_strided_slice %34 {offsets = [0, 2], sizes = [16, 1], strides = [1, 1]} : vector<16x3xf32> to vector<16x1xf32>
    %c2 = arith.constant 2 : index
    %c0_32 = arith.constant 0 : index
    %47 = vector.load %arg12[%c2, %c0_32] : memref<3x256xf32, #tpu.memory_space<vmem>>, vector<1x256xf32>
    %48 = vector.broadcast %46 : vector<16x1xf32> to vector<16x256xf32>
    %49 = vector.broadcast %47 : vector<1x256xf32> to vector<16x256xf32>
    %50 = arith.mulf %48, %49 : vector<16x256xf32>
    %51 = arith.addf %45, %50 : vector<16x256xf32>
    %52 = arith.truncf %33 : vector<16x256xf32> to vector<16x256xbf16>
    %c0_33 = arith.constant 0 : index
    %c0_34 = arith.constant 0 : index
    %53 = vector.load %arg11[%c0_33, %c0_34] : memref<256x256xbf16, #tpu.memory_space<vmem>>, vector<256x256xbf16>
    %cst_35 = arith.constant dense<0.000000e+00> : vector<16x256xf32>
    %54 = tpu.matmul %52, %53, %cst_35 {dimension_numbers = #tpu.dot_dimension_numbers<[1], [0], [0], [1], [0, 0, 1, 1], [], []>} : vector<16x256xbf16>, vector<256x256xbf16>, vector<16x256xf32> -> vector<16x256xf32>
    %55 = arith.addf %54, %51 : vector<16x256xf32>
    %c0_36 = arith.constant 0 : index
    %c0_37 = arith.constant 0 : index
    %56 = vector.load %arg13[%c0_36, %c0_37] : memref<1x256xf32, #tpu.memory_space<vmem>>, vector<1x256xf32>
    %57 = vector.broadcast %56 : vector<1x256xf32> to vector<16x256xf32>
    %58 = arith.addf %55, %57 : vector<16x256xf32>
    %c0_38 = arith.constant 0 : index
    %c0_39 = arith.constant 0 : index
    %59 = vector.load %arg14[%c0_38, %c0_39] : memref<16x256xf32, #tpu.memory_space<vmem>>, vector<16x256xf32>
    tpu.vector_store %arg14[%c0_38, %c0_39], %58 {strides = array<i32>} : memref<16x256xf32, #tpu.memory_space<vmem>>, vector<16x256xf32>,
    return
  }
  func.func @transform_0(%arg0: i32) -> (i32, i32) {
    %c0_i32 = arith.constant 0 : i32
    %c0_i32_0 = arith.constant 0 : i32
    return %arg0, %c0_i32 : i32, i32
  }
  func.func @transform_1(%arg0: i32) -> (i32, i32) {
    %c0_i32 = arith.constant 0 : i32
    %c0_i32_0 = arith.constant 0 : i32
    return %arg0, %c0_i32 : i32, i32
  }
  func.func @transform_2(%arg0: i32) -> (i32, i32) {
    %c0_i32 = arith.constant 0 : i32
    %c0_i32_0 = arith.constant 0 : i32
    return %arg0, %c0_i32 : i32, i32
  }
  func.func @transform_3(%arg0: i32) -> (i32, i32) {
    %c0_i32 = arith.constant 0 : i32
    %c0_i32_0 = arith.constant 0 : i32
    %c0_i32_1 = arith.constant 0 : i32
    return %c0_i32, %c0_i32_0 : i32, i32
  }
  func.func @transform_4(%arg0: i32) -> (i32, i32) {
    %c0_i32 = arith.constant 0 : i32
    %c0_i32_0 = arith.constant 0 : i32
    %c0_i32_1 = arith.constant 0 : i32
    return %c0_i32, %c0_i32_0 : i32, i32
  }
  func.func @transform_5(%arg0: i32) -> (i32, i32) {
    %c0_i32 = arith.constant 0 : i32
    %c0_i32_0 = arith.constant 0 : i32
    %c0_i32_1 = arith.constant 0 : i32
    return %c0_i32, %c0_i32_0 : i32, i32
  }
  func.func @transform_6(%arg0: i32) -> (i32, i32) {
    %c0_i32 = arith.constant 0 : i32
    %c0_i32_0 = arith.constant 0 : i32
    %c0_i32_1 = arith.constant 0 : i32
    return %c0_i32, %c0_i32_0 : i32, i32
  }
  func.func @transform_7(%arg0: i32) -> (i32, i32) {
    %c0_i32 = arith.constant 0 : i32
    %c0_i32_0 = arith.constant 0 : i32
    %c0_i32_1 = arith.constant 0 : i32
    return %c0_i32, %c0_i32_0 : i32, i32
  }
  func.func @transform_8(%arg0: i32) -> (i32, i32) {
    %c0_i32 = arith.constant 0 : i32
    %c0_i32_0 = arith.constant 0 : i32
    %c0_i32_1 = arith.constant 0 : i32
    return %c0_i32, %c0_i32_0 : i32, i32
  }
  func.func @transform_9(%arg0: i32) -> (i32, i32) {
    %c0_i32 = arith.constant 0 : i32
    %c0_i32_0 = arith.constant 0 : i32
    %c0_i32_1 = arith.constant 0 : i32
    return %c0_i32, %c0_i32_0 : i32, i32
  }
  func.func @transform_10(%arg0: i32) -> (i32, i32) {
    %c0_i32 = arith.constant 0 : i32
    %c0_i32_0 = arith.constant 0 : i32
    %c0_i32_1 = arith.constant 0 : i32
    return %c0_i32, %c0_i32_0 : i32, i32
  }
  func.func @transform_11(%arg0: i32) -> (i32, i32) {
    %c0_i32 = arith.constant 0 : i32
    %c0_i32_0 = arith.constant 0 : i32
    %c0_i32_1 = arith.constant 0 : i32
    return %c0_i32, %c0_i32_0 : i32, i32
  }
  func.func @transform_12(%arg0: i32) -> (i32, i32) {
    %c0_i32 = arith.constant 0 : i32
    %c0_i32_0 = arith.constant 0 : i32
    %c0_i32_1 = arith.constant 0 : i32
    return %c0_i32, %c0_i32_0 : i32, i32
  }
  func.func @transform_13(%arg0: i32) -> (i32, i32) {
    %c0_i32 = arith.constant 0 : i32
    %c0_i32_0 = arith.constant 0 : i32
    return %arg0, %c0_i32 : i32, i32
  }
}

</mosaic_0001>

<llo_original>
// kernel: tpu_custom_call.1
$region0: #{tpu_custom_call.1}
  #allocation0 [shape = 'u32[]', space=smem, size = 0x4, offset = 0x4, fixed_abs, tag = 'smem constant byte address 0x4 - core index']
  #allocation1 [shape = 'u32[144,128]{1,0:T(1,128)}', space=vmem, size = 0x12000, scoped, tag = 'internal scratch']
  %s0 = inlined_call_operand.hbm [shape: bf16[16,1024], index: 0, kind: input, shape index: {}]
  %s1 = inlined_call_operand.hbm [shape: bf16[16,1024], index: 1, kind: input, shape index: {}]
  %s2 = inlined_call_operand.hbm [shape: f32[16,3], index: 2, kind: input, shape index: {}]
  %s3 = inlined_call_operand.hbm [shape: bf16[1024,32], index: 3, kind: input, shape index: {}]
  %s4 = inlined_call_operand.hbm [shape: f32[1,32], index: 4, kind: input, shape index: {}]
  %s5 = inlined_call_operand.hbm [shape: bf16[32,256], index: 5, kind: input, shape index: {}]
  %s6 = inlined_call_operand.hbm [shape: bf16[32,256], index: 6, kind: input, shape index: {}]
  %s7 = inlined_call_operand.hbm [shape: f32[1,256], index: 7, kind: input, shape index: {}]
  %s8 = inlined_call_operand.hbm [shape: bf16[256,256], index: 8, kind: input, shape index: {}]
  %s9 = inlined_call_operand.hbm [shape: f32[1,256], index: 9, kind: input, shape index: {}]
  %s10 = inlined_call_operand.hbm [shape: bf16[256,256], index: 10, kind: input, shape index: {}]
  %s11 = inlined_call_operand.hbm [shape: f32[3,256], index: 11, kind: input, shape index: {}]
  %s12 = inlined_call_operand.hbm [shape: f32[1,256], index: 12, kind: input, shape index: {}]
  %s13 = inlined_call_operand.hbm [shape: f32[16,256], index: 13, kind: output, shape index: {}]
  %s14 = sld [smem:[#allocation0]]
  $region114: #{tpu_custom_call.1} parent=0
    _
  %s16 = ssub.s32 1, %s14
  %s17 = scalar_select 0, %s16, %s14
  $region1: #{tpu_custom_call.1} parent=0
    #allocation2 [shape = 'u8[32768]{0}', space=vmem, size = 0x8000, scoped, tag = 'input window, operand 0, single buffered']
    #allocation3 [shape = 's32[1]{0}', space=sflag, size = 0x4, scoped, tag = 'scoped memory for tpu_custom_call.1']
    #allocation4 [shape = 's32[1]{0}', space=sflag, size = 0x4, scoped, tag = 'scoped memory for tpu_custom_call.1']
    #allocation5 [shape = 'u8[32768]{0}', space=vmem, size = 0x8000, scoped, tag = 'input window, operand 1, single buffered']
    #allocation6 [shape = 's32[1]{0}', space=sflag, size = 0x4, scoped, tag = 'scoped memory for tpu_custom_call.1']
    #allocation7 [shape = 'u8[8192]{0}', space=vmem, size = 0x2000, scoped, tag = 'input window, operand 2, single buffered']
    #allocation8 [shape = 'u8[262144]{0}', space=vmem, size = 0x40000, scoped, tag = 'input window, operand 3, single buffered']
    #allocation9 [shape = 's32[1]{0}', space=sflag, size = 0x4, scoped, tag = 'scoped memory for tpu_custom_call.1']
    #allocation10 [shape = 'u8[512]{0}', space=vmem, size = 0x400, scoped, tag = 'input window, operand 4, single buffered']
    #allocation11 [shape = 'u8[16384]{0}', space=vmem, size = 0x4000, scoped, tag = 'input window, operand 5, single buffered']
    #allocation12 [shape = 's32[1]{0}', space=sflag, size = 0x4, scoped, tag = 'scoped memory for tpu_custom_call.1']
    #allocation13 [shape = 'u8[16384]{0}', space=vmem, size = 0x4000, scoped, tag = 'input window, operand 6, single buffered']
    #allocation14 [shape = 'u8[1024]{0}', space=vmem, size = 0x400, scoped, tag = 'input window, operand 7, single buffered']
    #allocation15 [shape = 's32[1]{0}', space=sflag, size = 0x4, scoped, tag = 'scoped memory for tpu_custom_call.1']
    #allocation16 [shape = 'u8[131072]{0}', space=vmem, size = 0x20000, scoped, tag = 'input window, operand 8, single buffered']
    #allocation17 [shape = 'u8[1024]{0}', space=vmem, size = 0x400, scoped, tag = 'input window, operand 9, single buffered']
    #allocation18 [shape = 's32[1]{0}', space=sflag, size = 0x4, scoped, tag = 'scoped memory for tpu_custom_call.1']
    #allocation19 [shape = 'u8[131072]{0}', space=vmem, size = 0x20000, scoped, tag = 'input window, operand 10, single buffered']
    #allocation20 [shape = 'u8[4096]{0}', space=vmem, size = 0x1000, scoped, tag = 'input window, operand 11, single buffered']
    #allocation21 [shape = 's32[1]{0}', space=sflag, size = 0x4, scoped, tag = 'scoped memory for tpu_custom_call.1']
    #allocation22 [shape = 'u8[1024]{0}', space=vmem, size = 0x400, scoped, tag = 'input window, operand 12, single buffered']
    #allocation23 [shape = 'u8[16384]{0}', space=vmem, size = 0x4000, scoped, tag = 'output window, operand 0, single buffered']
    %18 = vsyncpa [#allocation3], 0
    %19 = vsyncpa [#allocation6], 0
    %20 = vsyncpa [#allocation9], 0
    %21 = vsyncpa [#allocation12], 0
    %22 = vsyncpa [#allocation15], 0
    %23 = vsyncpa [#allocation18], 0
    %24 = vsyncpa [#allocation21], 0
    %25 = vsyncpa [#allocation4], 0
    // Predicated region
    $region2: #{tpu_custom_call.1} parent=1 // pred_check
      _
    $region3: #{tpu_custom_call.1} parent=1 // pred_check_branch
      %27 = sbr.rel (0) target = $region5
    $region4: #{tpu_custom_call.1} parent=1 // pred_region
      %s29 = ssub.s32 1024, 1024
      %30 = vsyncadd [#allocation3], %s29
      %s31 = sshll.u32 [#allocation2], 4
      %s32 = int_to_ptr.vmem [resolvable:$true] %s31
      %37 = dma.hbm_to_vmem [thread:$0]  %s0, 1024, %s32, [#allocation3], 512, 512, 32
    $region5: #{tpu_custom_call.1} parent=1 // pred_fallthru
      _
    // Predicated region
    $region6: #{tpu_custom_call.1} parent=1 // pred_check
      _
    $region7: #{tpu_custom_call.1} parent=1 // pred_check_branch
      %39 = sbr.rel (0) target = $region9
    $region8: #{tpu_custom_call.1} parent=1 // pred_region
      %s41 = ssub.s32 1024, 1024
      %42 = vsyncadd [#allocation6], %s41
      %s43 = sshll.u32 [#allocation5], 4
      %s44 = int_to_ptr.vmem [resolvable:$true] %s43
      %49 = dma.hbm_to_vmem [thread:$0]  %s1, 1024, %s44, [#allocation6], 512, 512, 32
    $region9: #{tpu_custom_call.1} parent=1 // pred_fallthru
      _
    // Predicated region
    $region10: #{tpu_custom_call.1} parent=1 // pred_check
      _
    $region11: #{tpu_custom_call.1} parent=1 // pred_check_branch
      %51 = sbr.rel (0) target = $region13
    $region12: #{tpu_custom_call.1} parent=1 // pred_region
      %s53 = ssub.s32 256, 256
      %54 = vsyncadd [#allocation6], %s53
      %s55 = sshll.u32 [#allocation7], 4
      %s56 = int_to_ptr.vmem [resolvable:$true] %s55
      %61 = dma.hbm_to_vmem [thread:$0]  %s2, 256, %s56, [#allocation6], 128, 128, 8
    $region13: #{tpu_custom_call.1} parent=1 // pred_fallthru
      _
    // Predicated region
    $region14: #{tpu_custom_call.1} parent=1 // pred_check
      _
    $region15: #{tpu_custom_call.1} parent=1 // pred_check_branch
      %63 = sbr.rel (0) target = $region17
    $region16: #{tpu_custom_call.1} parent=1 // pred_region
      %s65 = ssub.s32 8192, 8192
      %66 = vsyncadd [#allocation9], %s65
      %s67 = sshll.u32 [#allocation8], 4
      %s68 = int_to_ptr.vmem [resolvable:$true] %s67
      %73 = dma.hbm_to_vmem [thread:$0]  %s3, 8192, %s68, [#allocation9], 64, 64, 4
    $region17: #{tpu_custom_call.1} parent=1 // pred_fallthru
      _
    // Predicated region
    $region18: #{tpu_custom_call.1} parent=1 // pred_check
      _
    $region19: #{tpu_custom_call.1} parent=1 // pred_check_branch
      %75 = sbr.rel (0) target = $region21
    $region20: #{tpu_custom_call.1} parent=1 // pred_region
      %s77 = ssub.s32 16, 16
      %78 = vsyncadd [#allocation9], %s77
      %s80 = sshll.u32 [#allocation10], 4
      %s81 = int_to_ptr.vmem [resolvable:$true] %s80
      %83 = dma.hbm_to_vmem [thread:$0]  %s4, 16, %s81, [#allocation9]
    $region21: #{tpu_custom_call.1} parent=1 // pred_fallthru
      _
    // Predicated region
    $region22: #{tpu_custom_call.1} parent=1 // pred_check
      _
    $region23: #{tpu_custom_call.1} parent=1 // pred_check_branch
      %85 = sbr.rel (0) target = $region25
    $region24: #{tpu_custom_call.1} parent=1 // pred_region
      %s87 = ssub.s32 512, 512
      %88 = vsyncadd [#allocation12], %s87
      %s89 = sshll.u32 [#allocation11], 4
      %s90 = int_to_ptr.vmem [resolvable:$true] %s89
      %95 = dma.hbm_to_vmem [thread:$0]  %s5, 512, %s90, [#allocation12], 128, 128, 8
    $region25: #{tpu_custom_call.1} parent=1 // pred_fallthru
      _
    // Predicated region
    $region26: #{tpu_custom_call.1} parent=1 // pred_check
      _
    $region27: #{tpu_custom_call.1} parent=1 // pred_check_branch
      %97 = sbr.rel (0) target = $region29
    $region28: #{tpu_custom_call.1} parent=1 // pred_region
      %s99 = ssub.s32 512, 512
      %100 = vsyncadd [#allocation12], %s99
      %s101 = sshll.u32 [#allocation13], 4
      %s102 = int_to_ptr.vmem [resolvable:$true] %s101
      %107 = dma.hbm_to_vmem [thread:$0]  %s6, 512, %s102, [#allocation12], 128, 128, 8
    $region29: #{tpu_custom_call.1} parent=1 // pred_fallthru
      _
    // Predicated region
    $region30: #{tpu_custom_call.1} parent=1 // pred_check
      _
    $region31: #{tpu_custom_call.1} parent=1 // pred_check_branch
      %109 = sbr.rel (0) target = $region33
    $region32: #{tpu_custom_call.1} parent=1 // pred_region
      %s111 = ssub.s32 32, 32
      %112 = vsyncadd [#allocation15], %s111
      %s114 = sshll.u32 [#allocation14], 4
      %s115 = int_to_ptr.vmem [resolvable:$true] %s114
      %117 = dma.hbm_to_vmem [thread:$0]  %s7, 32, %s115, [#allocation15]
    $region33: #{tpu_custom_call.1} parent=1 // pred_fallthru
      _
    // Predicated region
    $region34: #{tpu_custom_call.1} parent=1 // pred_check
      _
    $region35: #{tpu_custom_call.1} parent=1 // pred_check_branch
      %119 = sbr.rel (0) target = $region37
    $region36: #{tpu_custom_call.1} parent=1 // pred_region
      %s121 = ssub.s32 4096, 4096
      %122 = vsyncadd [#allocation15], %s121
      %s123 = sshll.u32 [#allocation16], 4
      %s124 = int_to_ptr.vmem [resolvable:$true] %s123
      %129 = dma.hbm_to_vmem [thread:$0]  %s8, 4096, %s124, [#allocation15], 128, 128, 8
    $region37: #{tpu_custom_call.1} parent=1 // pred_fallthru
      _
    // Predicated region
    $region38: #{tpu_custom_call.1} parent=1 // pred_check
      _
    $region39: #{tpu_custom_call.1} parent=1 // pred_check_branch
      %131 = sbr.rel (0) target = $region41
    $region40: #{tpu_custom_call.1} parent=1 // pred_region
      %s133 = ssub.s32 32, 32
      %134 = vsyncadd [#allocation18], %s133
      %s136 = sshll.u32 [#allocation17], 4
      %s137 = int_to_ptr.vmem [resolvable:$true] %s136
      %139 = dma.hbm_to_vmem [thread:$0]  %s9, 32, %s137, [#allocation18]
    $region41: #{tpu_custom_call.1} parent=1 // pred_fallthru
      _
    // Predicated region
    $region42: #{tpu_custom_call.1} parent=1 // pred_check
      _
    $region43: #{tpu_custom_call.1} parent=1 // pred_check_branch
      %141 = sbr.rel (0) target = $region45
    $region44: #{tpu_custom_call.1} parent=1 // pred_region
      %s143 = ssub.s32 4096, 4096
      %144 = vsyncadd [#allocation18], %s143
      %s145 = sshll.u32 [#allocation19], 4
      %s146 = int_to_ptr.vmem [resolvable:$true] %s145
      %151 = dma.hbm_to_vmem [thread:$0]  %s10, 4096, %s146, [#allocation18], 128, 128, 8
    $region45: #{tpu_custom_call.1} parent=1 // pred_fallthru
      _
    // Predicated region
    $region46: #{tpu_custom_call.1} parent=1 // pred_check
      _
    $region47: #{tpu_custom_call.1} parent=1 // pred_check_branch
      %153 = sbr.rel (0) target = $region49
    $region48: #{tpu_custom_call.1} parent=1 // pred_region
      %s155 = ssub.s32 128, 128
      %156 = vsyncadd [#allocation21], %s155
      %s158 = sshll.u32 [#allocation20], 4
      %s159 = int_to_ptr.vmem [resolvable:$true] %s158
      %161 = dma.hbm_to_vmem [thread:$0]  %s11, 128, %s159, [#allocation21]
    $region49: #{tpu_custom_call.1} parent=1 // pred_fallthru
      _
    // Predicated region
    $region50: #{tpu_custom_call.1} parent=1 // pred_check
      _
    $region51: #{tpu_custom_call.1} parent=1 // pred_check_branch
      %163 = sbr.rel (0) target = $region53
    $region52: #{tpu_custom_call.1} parent=1 // pred_region
      %s165 = ssub.s32 32, 32
      %166 = vsyncadd [#allocation21], %s165
      %s168 = sshll.u32 [#allocation22], 4
      %s169 = int_to_ptr.vmem [resolvable:$true] %s168
      %171 = dma.hbm_to_vmem [thread:$0]  %s12, 32, %s169, [#allocation21]
    $region53: #{tpu_custom_call.1} parent=1 // pred_fallthru
      _
    // Predicated region
    $region54: #{tpu_custom_call.1} parent=1 // pred_check
      _
    $region55: #{tpu_custom_call.1} parent=1 // pred_check_branch
      %173 = sbr.rel (0) target = $region57
    $region56: #{tpu_custom_call.1} parent=1 // pred_region
      %174 = dma.done [#allocation3], 1024
    $region57: #{tpu_custom_call.1} parent=1 // pred_fallthru
      _
    // Predicated region
    $region58: #{tpu_custom_call.1} parent=1 // pred_check
      _
    $region59: #{tpu_custom_call.1} parent=1 // pred_check_branch
      %176 = sbr.rel (0) target = $region61
    $region60: #{tpu_custom_call.1} parent=1 // pred_region
      %177 = dma.done [#allocation6], 1024
    $region61: #{tpu_custom_call.1} parent=1 // pred_fallthru
      _
    // Predicated region
    $region62: #{tpu_custom_call.1} parent=1 // pred_check
      _
    $region63: #{tpu_custom_call.1} parent=1 // pred_check_branch
      %179 = sbr.rel (0) target = $region65
    $region64: #{tpu_custom_call.1} parent=1 // pred_region
      %180 = dma.done [#allocation6], 256
    $region65: #{tpu_custom_call.1} parent=1 // pred_fallthru
      _
    // Predicated region
    $region66: #{tpu_custom_call.1} parent=1 // pred_check
      _
    $region67: #{tpu_custom_call.1} parent=1 // pred_check_branch
      %182 = sbr.rel (0) target = $region69
    $region68: #{tpu_custom_call.1} parent=1 // pred_region
      %183 = dma.done [#allocation9], 8192
    $region69: #{tpu_custom_call.1} parent=1 // pred_fallthru
      _
    // Predicated region
    $region70: #{tpu_custom_call.1} parent=1 // pred_check
      _
    $region71: #{tpu_custom_call.1} parent=1 // pred_check_branch
      %185 = sbr.rel (0) target = $region73
    $region72: #{tpu_custom_call.1} parent=1 // pred_region
      %186 = dma.done [#allocation9], 16
    $region73: #{tpu_custom_call.1} parent=1 // pred_fallthru
      _
    // Predicated region
    $region74: #{tpu_custom_call.1} parent=1 // pred_check
      _
    $region75: #{tpu_custom_call.1} parent=1 // pred_check_branch
      %188 = sbr.rel (0) target = $region77
    $region76: #{tpu_custom_call.1} parent=1 // pred_region
      %189 = dma.done [#allocation12], 512
    $region77: #{tpu_custom_call.1} parent=1 // pred_fallthru
      _
    // Predicated region
    $region78: #{tpu_custom_call.1} parent=1 // pred_check
      _
    $region79: #{tpu_custom_call.1} parent=1 // pred_check_branch
      %191 = sbr.rel (0) target = $region81
    $region80: #{tpu_custom_call.1} parent=1 // pred_region
      %192 = dma.done [#allocation12], 512
    $region81: #{tpu_custom_call.1} parent=1 // pred_fallthru
      _
    // Predicated region
    $region82: #{tpu_custom_call.1} parent=1 // pred_check
      _
    $region83: #{tpu_custom_call.1} parent=1 // pred_check_branch
      %194 = sbr.rel (0) target = $region85
    $region84: #{tpu_custom_call.1} parent=1 // pred_region
      %195 = dma.done [#allocation15], 32
    $region85: #{tpu_custom_call.1} parent=1 // pred_fallthru
      _
    // Predicated region
    $region86: #{tpu_custom_call.1} parent=1 // pred_check
      _
    $region87: #{tpu_custom_call.1} parent=1 // pred_check_branch
      %197 = sbr.rel (0) target = $region89
    $region88: #{tpu_custom_call.1} parent=1 // pred_region
      %198 = dma.done [#allocation15], 4096
    $region89: #{tpu_custom_call.1} parent=1 // pred_fallthru
      _
    // Predicated region
    $region90: #{tpu_custom_call.1} parent=1 // pred_check
      _
    $region91: #{tpu_custom_call.1} parent=1 // pred_check_branch
      %200 = sbr.rel (0) target = $region93
    $region92: #{tpu_custom_call.1} parent=1 // pred_region
      %201 = dma.done [#allocation18], 32
    $region93: #{tpu_custom_call.1} parent=1 // pred_fallthru
      _
    // Predicated region
    $region94: #{tpu_custom_call.1} parent=1 // pred_check
      _
    $region95: #{tpu_custom_call.1} parent=1 // pred_check_branch
      %203 = sbr.rel (0) target = $region97
    $region96: #{tpu_custom_call.1} parent=1 // pred_region
      %204 = dma.done [#allocation18], 4096
    $region97: #{tpu_custom_call.1} parent=1 // pred_fallthru
      _
    // Predicated region
    $region98: #{tpu_custom_call.1} parent=1 // pred_check
      _
    $region99: #{tpu_custom_call.1} parent=1 // pred_check_branch
      %206 = sbr.rel (0) target = $region101
    $region100: #{tpu_custom_call.1} parent=1 // pred_region
      %207 = dma.done [#allocation21], 128
    $region101: #{tpu_custom_call.1} parent=1 // pred_fallthru
      _
    // Predicated region
    $region102: #{tpu_custom_call.1} parent=1 // pred_check
      _
    $region103: #{tpu_custom_call.1} parent=1 // pred_check_branch
      %209 = sbr.rel (0) target = $region105
    $region104: #{tpu_custom_call.1} parent=1 // pred_region
      %210 = dma.done [#allocation21], 32
    $region105: #{tpu_custom_call.1} parent=1 // pred_fallthru
      _
    %v212 = vld [vmem:[#allocation2] sm:$0xff]
    %v213 = vld [vmem:[#allocation2 + $0x8] sm:$0xff]
    %v214 = vld [vmem:[#allocation2 + $0x10] sm:$0xff]
    %v215 = vld [vmem:[#allocation2 + $0x18] sm:$0xff]
    %v216 = vld [vmem:[#allocation2 + $0x20] sm:$0xff]
    %v217 = vld [vmem:[#allocation2 + $0x28] sm:$0xff]
    %v218 = vld [vmem:[#allocation2 + $0x30] sm:$0xff]
    %v219 = vld [vmem:[#allocation2 + $0x38] sm:$0xff]
    %v220 = vld [vmem:[#allocation8] sm:$0xf]
    %v221 = vld [vmem:[#allocation8 + $0x4] sm:$0xf]
    %v222 = vld [vmem:[#allocation8 + $0x8] sm:$0xf]
    %v223 = vld [vmem:[#allocation8 + $0xc] sm:$0xf]
    %v224 = vld [vmem:[#allocation8 + $0x10] sm:$0xf]
    %v225 = vld [vmem:[#allocation8 + $0x14] sm:$0xf]
    %v226 = vld [vmem:[#allocation8 + $0x18] sm:$0xf]
    %v227 = vld [vmem:[#allocation8 + $0x1c] sm:$0xf]
    %v228 = vld [vmem:[#allocation8 + $0x20] sm:$0xf]
    %v229 = vld [vmem:[#allocation8 + $0x24] sm:$0xf]
    %v230 = vld [vmem:[#allocation8 + $0x28] sm:$0xf]
    %v231 = vld [vmem:[#allocation8 + $0x2c] sm:$0xf]
    %v232 = vld [vmem:[#allocation8 + $0x30] sm:$0xf]
    %v233 = vld [vmem:[#allocation8 + $0x34] sm:$0xf]
    %v234 = vld [vmem:[#allocation8 + $0x38] sm:$0xf]
    %v235 = vld [vmem:[#allocation8 + $0x3c] sm:$0xf]
    %v236 = vld [vmem:[#allocation8 + $0x40] sm:$0xf]
    %v237 = vld [vmem:[#allocation8 + $0x44] sm:$0xf]
    %v238 = vld [vmem:[#allocation8 + $0x48] sm:$0xf]
    %v239 = vld [vmem:[#allocation8 + $0x4c] sm:$0xf]
    %v240 = vld [vmem:[#allocation8 + $0x50] sm:$0xf]
    %v241 = vld [vmem:[#allocation8 + $0x54] sm:$0xf]
    %v242 = vld [vmem:[#allocation8 + $0x58] sm:$0xf]
    %v243 = vld [vmem:[#allocation8 + $0x5c] sm:$0xf]
    %v244 = vld [vmem:[#allocation8 + $0x60] sm:$0xf]
    %v245 = vld [vmem:[#allocation8 + $0x64] sm:$0xf]
    %v246 = vld [vmem:[#allocation8 + $0x68] sm:$0xf]
    %v247 = vld [vmem:[#allocation8 + $0x6c] sm:$0xf]
    %v248 = vld [vmem:[#allocation8 + $0x70] sm:$0xf]
    %v249 = vld [vmem:[#allocation8 + $0x74] sm:$0xf]
    %v250 = vld [vmem:[#allocation8 + $0x78] sm:$0xf]
    %v251 = vld [vmem:[#allocation8 + $0x7c] sm:$0xf]
    %v252 = vld [vmem:[#allocation8 + $0x80] sm:$0xf]
    %v253 = vld [vmem:[#allocation8 + $0x84] sm:$0xf]
    %v254 = vld [vmem:[#allocation8 + $0x88] sm:$0xf]
    %v255 = vld [vmem:[#allocation8 + $0x8c] sm:$0xf]
    %v256 = vld [vmem:[#allocation8 + $0x90] sm:$0xf]
    %v257 = vld [vmem:[#allocation8 + $0x94] sm:$0xf]
    %v258 = vld [vmem:[#allocation8 + $0x98] sm:$0xf]
    %v259 = vld [vmem:[#allocation8 + $0x9c] sm:$0xf]
    %v260 = vld [vmem:[#allocation8 + $0xa0] sm:$0xf]
    %v261 = vld [vmem:[#allocation8 + $0xa4] sm:$0xf]
    %v262 = vld [vmem:[#allocation8 + $0xa8] sm:$0xf]
    %v263 = vld [vmem:[#allocation8 + $0xac] sm:$0xf]
    %v264 = vld [vmem:[#allocation8 + $0xb0] sm:$0xf]
    %v265 = vld [vmem:[#allocation8 + $0xb4] sm:$0xf]
    %v266 = vld [vmem:[#allocation8 + $0xb8] sm:$0xf]
    %v267 = vld [vmem:[#allocation8 + $0xbc] sm:$0xf]
    %v268 = vld [vmem:[#allocation8 + $0xc0] sm:$0xf]
    %v269 = vld [vmem:[#allocation8 + $0xc4] sm:$0xf]
    %v270 = vld [vmem:[#allocation8 + $0xc8] sm:$0xf]
    %v271 = vld [vmem:[#allocation8 + $0xcc] sm:$0xf]
    %v272 = vld [vmem:[#allocation8 + $0xd0] sm:$0xf]
    %v273 = vld [vmem:[#allocation8 + $0xd4] sm:$0xf]
    %v274 = vld [vmem:[#allocation8 + $0xd8] sm:$0xf]
    %v275 = vld [vmem:[#allocation8 + $0xdc] sm:$0xf]
    %v276 = vld [vmem:[#allocation8 + $0xe0] sm:$0xf]
    %v277 = vld [vmem:[#allocation8 + $0xe4] sm:$0xf]
    %v278 = vld [vmem:[#allocation8 + $0xe8] sm:$0xf]
    %v279 = vld [vmem:[#allocation8 + $0xec] sm:$0xf]
    %v280 = vld [vmem:[#allocation8 + $0xf0] sm:$0xf]
    %v281 = vld [vmem:[#allocation8 + $0xf4] sm:$0xf]
    %v282 = vld [vmem:[#allocation8 + $0xf8] sm:$0xf]
    %v283 = vld [vmem:[#allocation8 + $0xfc] sm:$0xf]
    %v284 = vld [vmem:[#allocation8 + $0x100] sm:$0xf]
    %v285 = vld [vmem:[#allocation8 + $0x104] sm:$0xf]
    %v286 = vld [vmem:[#allocation8 + $0x108] sm:$0xf]
    %v287 = vld [vmem:[#allocation8 + $0x10c] sm:$0xf]
    %v288 = vld [vmem:[#allocation8 + $0x110] sm:$0xf]
    %v289 = vld [vmem:[#allocation8 + $0x114] sm:$0xf]
    %v290 = vld [vmem:[#allocation8 + $0x118] sm:$0xf]
    %v291 = vld [vmem:[#allocation8 + $0x11c] sm:$0xf]
    %v292 = vld [vmem:[#allocation8 + $0x120] sm:$0xf]
    %v293 = vld [vmem:[#allocation8 + $0x124] sm:$0xf]
    %v294 = vld [vmem:[#allocation8 + $0x128] sm:$0xf]
    %v295 = vld [vmem:[#allocation8 + $0x12c] sm:$0xf]
    %v296 = vld [vmem:[#allocation8 + $0x130] sm:$0xf]
    %v297 = vld [vmem:[#allocation8 + $0x134] sm:$0xf]
    %v298 = vld [vmem:[#allocation8 + $0x138] sm:$0xf]
    %v299 = vld [vmem:[#allocation8 + $0x13c] sm:$0xf]
    %v300 = vld [vmem:[#allocation8 + $0x140] sm:$0xf]
    %v301 = vld [vmem:[#allocation8 + $0x144] sm:$0xf]
    %v302 = vld [vmem:[#allocation8 + $0x148] sm:$0xf]
    %v303 = vld [vmem:[#allocation8 + $0x14c] sm:$0xf]
    %v304 = vld [vmem:[#allocation8 + $0x150] sm:$0xf]
    %v305 = vld [vmem:[#allocation8 + $0x154] sm:$0xf]
    %v306 = vld [vmem:[#allocation8 + $0x158] sm:$0xf]
    %v307 = vld [vmem:[#allocation8 + $0x15c] sm:$0xf]
    %v308 = vld [vmem:[#allocation8 + $0x160] sm:$0xf]
    %v309 = vld [vmem:[#allocation8 + $0x164] sm:$0xf]
    %v310 = vld [vmem:[#allocation8 + $0x168] sm:$0xf]
    %v311 = vld [vmem:[#allocation8 + $0x16c] sm:$0xf]
    %v312 = vld [vmem:[#allocation8 + $0x170] sm:$0xf]
    %v313 = vld [vmem:[#allocation8 + $0x174] sm:$0xf]
    %v314 = vld [vmem:[#allocation8 + $0x178] sm:$0xf]
    %v315 = vld [vmem:[#allocation8 + $0x17c] sm:$0xf]
    %v316 = vld [vmem:[#allocation8 + $0x180] sm:$0xf]
    %v317 = vld [vmem:[#allocation8 + $0x184] sm:$0xf]
    %v318 = vld [vmem:[#allocation8 + $0x188] sm:$0xf]
    %v319 = vld [vmem:[#allocation8 + $0x18c] sm:$0xf]
    %v320 = vld [vmem:[#allocation8 + $0x190] sm:$0xf]
    %v321 = vld [vmem:[#allocation8 + $0x194] sm:$0xf]
    %v322 = vld [vmem:[#allocation8 + $0x198] sm:$0xf]
    %v323 = vld [vmem:[#allocation8 + $0x19c] sm:$0xf]
    %v324 = vld [vmem:[#allocation8 + $0x1a0] sm:$0xf]
    %v325 = vld [vmem:[#allocation8 + $0x1a4] sm:$0xf]
    %v326 = vld [vmem:[#allocation8 + $0x1a8] sm:$0xf]
    %v327 = vld [vmem:[#allocation8 + $0x1ac] sm:$0xf]
    %v328 = vld [vmem:[#allocation8 + $0x1b0] sm:$0xf]
    %v329 = vld [vmem:[#allocation8 + $0x1b4] sm:$0xf]
    %v330 = vld [vmem:[#allocation8 + $0x1b8] sm:$0xf]
    %v331 = vld [vmem:[#allocation8 + $0x1bc] sm:$0xf]
    %v332 = vld [vmem:[#allocation8 + $0x1c0] sm:$0xf]
    %v333 = vld [vmem:[#allocation8 + $0x1c4] sm:$0xf]
    %v334 = vld [vmem:[#allocation8 + $0x1c8] sm:$0xf]
    %v335 = vld [vmem:[#allocation8 + $0x1cc] sm:$0xf]
    %v336 = vld [vmem:[#allocation8 + $0x1d0] sm:$0xf]
    %v337 = vld [vmem:[#allocation8 + $0x1d4] sm:$0xf]
    %v338 = vld [vmem:[#allocation8 + $0x1d8] sm:$0xf]
    %v339 = vld [vmem:[#allocation8 + $0x1dc] sm:$0xf]
    %v340 = vld [vmem:[#allocation8 + $0x1e0] sm:$0xf]
    %v341 = vld [vmem:[#allocation8 + $0x1e4] sm:$0xf]
    %v342 = vld [vmem:[#allocation8 + $0x1e8] sm:$0xf]
    %v343 = vld [vmem:[#allocation8 + $0x1ec] sm:$0xf]
    %v344 = vld [vmem:[#allocation8 + $0x1f0] sm:$0xf]
    %v345 = vld [vmem:[#allocation8 + $0x1f4] sm:$0xf]
    %v346 = vld [vmem:[#allocation8 + $0x1f8] sm:$0xf]
    %v347 = vld [vmem:[#allocation8 + $0x1fc] sm:$0xf]
    %v348 = vld [vmem:[#allocation10] sm:$0x1]
    %v350 = vlaneseq
    %v351 = vshrl.u32 %v350, 7
    %v352 = vsub.s32 0, %v351
    %v353 = vrot.slane %v348, %v352
    %v363 = vunpack.c.l.b16 %v212
    %v364 = vunpack.c.h.b16 %v212
    %v365 = vunpack.c.l.b16 %v213
    %v366 = vunpack.c.h.b16 %v213
    %v367 = vunpack.c.l.b16 %v214
    %v368 = vunpack.c.h.b16 %v214
    %v369 = vunpack.c.l.b16 %v215
    %v370 = vunpack.c.h.b16 %v215
    %v371 = vunpack.c.l.b16 %v216
    %v372 = vunpack.c.h.b16 %v216
    %v373 = vunpack.c.l.b16 %v217
    %v374 = vunpack.c.h.b16 %v217
    %v375 = vunpack.c.l.b16 %v218
    %v376 = vunpack.c.h.b16 %v218
    %v377 = vunpack.c.l.b16 %v219
    %v378 = vunpack.c.h.b16 %v219
    %v379 = vpack.c.b16 %v371, %v363
    %v380 = vpack.c.b16 %v372, %v364
    %v381 = vpack.c.b16 %v373, %v365
    %v382 = vpack.c.b16 %v374, %v366
    %v383 = vpack.c.b16 %v375, %v367
    %v384 = vpack.c.b16 %v376, %v368
    %v385 = vpack.c.b16 %v377, %v369
    %v386 = vpack.c.b16 %v378, %v370
    %v523 = vunpack.c.l.b16 %v220
    %v524 = vunpack.c.l.b16 %v221
    %v525 = vunpack.c.l.b16 %v222
    %v526 = vunpack.c.l.b16 %v223
    %v527 = vunpack.c.l.b16 %v224
    %v528 = vunpack.c.l.b16 %v225
    %v529 = vunpack.c.l.b16 %v226
    %v530 = vunpack.c.l.b16 %v227
    %v531 = vunpack.c.l.b16 %v228
    %v532 = vunpack.c.l.b16 %v229
    %v533 = vunpack.c.l.b16 %v230
    %v534 = vunpack.c.l.b16 %v231
    %v535 = vunpack.c.l.b16 %v232
    %v536 = vunpack.c.l.b16 %v233
    %v537 = vunpack.c.l.b16 %v234
    %v538 = vunpack.c.l.b16 %v235
    %v539 = vunpack.c.l.b16 %v236
    %v540 = vunpack.c.l.b16 %v237
    %v541 = vunpack.c.l.b16 %v238
    %v542 = vunpack.c.l.b16 %v239
    %v543 = vunpack.c.l.b16 %v240
    %v544 = vunpack.c.l.b16 %v241
    %v545 = vunpack.c.l.b16 %v242
    %v546 = vunpack.c.l.b16 %v243
    %v547 = vunpack.c.l.b16 %v244
    %v548 = vunpack.c.l.b16 %v245
    %v549 = vunpack.c.l.b16 %v246
    %v550 = vunpack.c.l.b16 %v247
    %v551 = vunpack.c.l.b16 %v248
    %v552 = vunpack.c.l.b16 %v249
    %v553 = vunpack.c.l.b16 %v250
    %v554 = vunpack.c.l.b16 %v251
    %v555 = vunpack.c.l.b16 %v252
    %v556 = vunpack.c.l.b16 %v253
    %v557 = vunpack.c.l.b16 %v254
    %v558 = vunpack.c.l.b16 %v255
    %v559 = vunpack.c.l.b16 %v256
    %v560 = vunpack.c.l.b16 %v257
    %v561 = vunpack.c.l.b16 %v258
    %v562 = vunpack.c.l.b16 %v259
    %v563 = vunpack.c.l.b16 %v260
    %v564 = vunpack.c.l.b16 %v261
    %v565 = vunpack.c.l.b16 %v262
    %v566 = vunpack.c.l.b16 %v263
    %v567 = vunpack.c.l.b16 %v264
    %v568 = vunpack.c.l.b16 %v265
    %v569 = vunpack.c.l.b16 %v266
    %v570 = vunpack.c.l.b16 %v267
    %v571 = vunpack.c.l.b16 %v268
    %v572 = vunpack.c.l.b16 %v269
    %v573 = vunpack.c.l.b16 %v270
    %v574 = vunpack.c.l.b16 %v271
    %v575 = vunpack.c.l.b16 %v272
    %v576 = vunpack.c.l.b16 %v273
    %v577 = vunpack.c.l.b16 %v274
    %v578 = vunpack.c.l.b16 %v275
    %v579 = vunpack.c.l.b16 %v276
    %v580 = vunpack.c.l.b16 %v277
    %v581 = vunpack.c.l.b16 %v278
    %v582 = vunpack.c.l.b16 %v279
    %v583 = vunpack.c.l.b16 %v280
    %v584 = vunpack.c.l.b16 %v281
    %v585 = vunpack.c.l.b16 %v282
    %v586 = vunpack.c.l.b16 %v283
    %v587 = vunpack.c.l.b16 %v284
    %v588 = vunpack.c.l.b16 %v285
    %v589 = vunpack.c.l.b16 %v286
    %v590 = vunpack.c.l.b16 %v287
    %v591 = vunpack.c.l.b16 %v288
    %v592 = vunpack.c.l.b16 %v289
    %v593 = vunpack.c.l.b16 %v290
    %v594 = vunpack.c.l.b16 %v291
    %v595 = vunpack.c.l.b16 %v292
    %v596 = vunpack.c.l.b16 %v293
    %v597 = vunpack.c.l.b16 %v294
    %v598 = vunpack.c.l.b16 %v295
    %v599 = vunpack.c.l.b16 %v296
    %v600 = vunpack.c.l.b16 %v297
    %v601 = vunpack.c.l.b16 %v298
    %v602 = vunpack.c.l.b16 %v299
    %v603 = vunpack.c.l.b16 %v300
    %v604 = vunpack.c.l.b16 %v301
    %v605 = vunpack.c.l.b16 %v302
    %v606 = vunpack.c.l.b16 %v303
    %v607 = vunpack.c.l.b16 %v304
    %v608 = vunpack.c.l.b16 %v305
    %v609 = vunpack.c.l.b16 %v306
    %v610 = vunpack.c.l.b16 %v307
    %v611 = vunpack.c.l.b16 %v308
    %v612 = vunpack.c.l.b16 %v309
    %v613 = vunpack.c.l.b16 %v310
    %v614 = vunpack.c.l.b16 %v311
    %v615 = vunpack.c.l.b16 %v312
    %v616 = vunpack.c.l.b16 %v313
    %v617 = vunpack.c.l.b16 %v314
    %v618 = vunpack.c.l.b16 %v315
    %v619 = vunpack.c.l.b16 %v316
    %v620 = vunpack.c.l.b16 %v317
    %v621 = vunpack.c.l.b16 %v318
    %v622 = vunpack.c.l.b16 %v319
    %v623 = vunpack.c.l.b16 %v320
    %v624 = vunpack.c.l.b16 %v321
    %v625 = vunpack.c.l.b16 %v322
    %v626 = vunpack.c.l.b16 %v323
    %v627 = vunpack.c.l.b16 %v324
    %v628 = vunpack.c.l.b16 %v325
    %v629 = vunpack.c.l.b16 %v326
    %v630 = vunpack.c.l.b16 %v327
    %v631 = vunpack.c.l.b16 %v328
    %v632 = vunpack.c.l.b16 %v329
    %v633 = vunpack.c.l.b16 %v330
    %v634 = vunpack.c.l.b16 %v331
    %v635 = vunpack.c.l.b16 %v332
    %v636 = vunpack.c.l.b16 %v333
    %v637 = vunpack.c.l.b16 %v334
    %v638 = vunpack.c.l.b16 %v335
    %v639 = vunpack.c.l.b16 %v336
    %v640 = vunpack.c.l.b16 %v337
    %v641 = vunpack.c.l.b16 %v338
    %v642 = vunpack.c.l.b16 %v339
    %v643 = vunpack.c.l.b16 %v340
    %v644 = vunpack.c.l.b16 %v341
    %v645 = vunpack.c.l.b16 %v342
    %v646 = vunpack.c.l.b16 %v343
    %v647 = vunpack.c.l.b16 %v344
    %v648 = vunpack.c.l.b16 %v345
    %v649 = vunpack.c.l.b16 %v346
    %v650 = vunpack.c.l.b16 %v347
    %v651 = vpack.c.b16 %v524, %v523
    %v652 = vpack.c.b16 %v526, %v525
    %v653 = vpack.c.b16 %v528, %v527
    %v654 = vpack.c.b16 %v530, %v529
    %v655 = vpack.c.b16 %v532, %v531
    %v656 = vpack.c.b16 %v534, %v533
    %v657 = vpack.c.b16 %v536, %v535
    %v658 = vpack.c.b16 %v538, %v537
    %v659 = vpack.c.b16 %v540, %v539
    %v660 = vpack.c.b16 %v542, %v541
    %v661 = vpack.c.b16 %v544, %v543
    %v662 = vpack.c.b16 %v546, %v545
    %v663 = vpack.c.b16 %v548, %v547
    %v664 = vpack.c.b16 %v550, %v549
    %v665 = vpack.c.b16 %v552, %v551
    %v666 = vpack.c.b16 %v554, %v553
    %v667 = vpack.c.b16 %v556, %v555
    %v668 = vpack.c.b16 %v558, %v557
    %v669 = vpack.c.b16 %v560, %v559
    %v670 = vpack.c.b16 %v562, %v561
    %v671 = vpack.c.b16 %v564, %v563
    %v672 = vpack.c.b16 %v566, %v565
    %v673 = vpack.c.b16 %v568, %v567
    %v674 = vpack.c.b16 %v570, %v569
    %v675 = vpack.c.b16 %v572, %v571
    %v676 = vpack.c.b16 %v574, %v573
    %v677 = vpack.c.b16 %v576, %v575
    %v678 = vpack.c.b16 %v578, %v577
    %v679 = vpack.c.b16 %v580, %v579
    %v680 = vpack.c.b16 %v582, %v581
    %v681 = vpack.c.b16 %v584, %v583
    %v682 = vpack.c.b16 %v586, %v585
    %v683 = vpack.c.b16 %v588, %v587
    %v684 = vpack.c.b16 %v590, %v589
    %v685 = vpack.c.b16 %v592, %v591
    %v686 = vpack.c.b16 %v594, %v593
    %v687 = vpack.c.b16 %v596, %v595
    %v688 = vpack.c.b16 %v598, %v597
    %v689 = vpack.c.b16 %v600, %v599
    %v690 = vpack.c.b16 %v602, %v601
    %v691 = vpack.c.b16 %v604, %v603
    %v692 = vpack.c.b16 %v606, %v605
    %v693 = vpack.c.b16 %v608, %v607
    %v694 = vpack.c.b16 %v610, %v609
    %v695 = vpack.c.b16 %v612, %v611
    %v696 = vpack.c.b16 %v614, %v613
    %v697 = vpack.c.b16 %v616, %v615
    %v698 = vpack.c.b16 %v618, %v617
    %v699 = vpack.c.b16 %v620, %v619
    %v700 = vpack.c.b16 %v622, %v621
    %v701 = vpack.c.b16 %v624, %v623
    %v702 = vpack.c.b16 %v626, %v625
    %v703 = vpack.c.b16 %v628, %v627
    %v704 = vpack.c.b16 %v630, %v629
    %v705 = vpack.c.b16 %v632, %v631
    %v706 = vpack.c.b16 %v634, %v633
    %v707 = vpack.c.b16 %v636, %v635
    %v708 = vpack.c.b16 %v638, %v637
    %v709 = vpack.c.b16 %v640, %v639
    %v710 = vpack.c.b16 %v642, %v641
    %v711 = vpack.c.b16 %v644, %v643
    %v712 = vpack.c.b16 %v646, %v645
    %v713 = vpack.c.b16 %v648, %v647
    %v714 = vpack.c.b16 %v650, %v649
    %779 = vmatprep.subr.bf16.mxu0 0
    %780 = vmatpush1.bf16.msra.mxu0 %v651
    %781 = vmatprep.subr.bf16.mxu0 0
    %782 = vmatpush1.bf16.msra.mxu0 %v652
    %783 = vmatprep.subr.bf16.mxu0 0
    %784 = vmatpush1.bf16.msra.mxu0 %v653
    %785 = vmatprep.subr.bf16.mxu0 0
    %786 = vmatpush1.bf16.msra.mxu0 %v654
    %787 = vmatprep.subr.bf16.mxu0 0
    %788 = vmatpush1.bf16.msra.mxu0 %v655
    %789 = vmatprep.subr.bf16.mxu0 0
    %790 = vmatpush1.bf16.msra.mxu0 %v656
    %791 = vmatprep.subr.bf16.mxu0 0
    %792 = vmatpush1.bf16.msra.mxu0 %v657
    %793 = vmatprep.subr.bf16.mxu0 0
    %794 = vmatpush1.bf16.msra.mxu0 %v658
    %795 = vmatprep.subr.bf16.mxu0 0
    %796 = vmatpush1.bf16.msra.mxu0 %v659
    %797 = vmatprep.subr.bf16.mxu0 0
    %798 = vmatpush1.bf16.msra.mxu0 %v660
    %799 = vmatprep.subr.bf16.mxu0 0
    %800 = vmatpush1.bf16.msra.mxu0 %v661
    %801 = vmatprep.subr.bf16.mxu0 0
    %802 = vmatpush1.bf16.msra.mxu0 %v662
    %803 = vmatprep.subr.bf16.mxu0 0
    %804 = vmatpush1.bf16.msra.mxu0 %v663
    %805 = vmatprep.subr.bf16.mxu0 0
    %806 = vmatpush1.bf16.msra.mxu0 %v664
    %807 = vmatprep.subr.bf16.mxu0 0
    %808 = vmatpush1.bf16.msra.mxu0 %v665
    %809 = vmatprep.subr.bf16.mxu0 0
    %810 = vmatpush1.bf16.msra.mxu0 %v666
    %811 = vmatprep.mubr.bf16.mxu0 %v380
    %812 = vmatmul.mubr.bf16.gmra.mrb[0].mxu0 %v379
    %v813 = vpop.f32.mrb[0].mxu0
    %v814 = vadd.f32 %v353, %v813
    %v815 = vpop.f32.mrb[0].mxu0
    %v816 = vpop.f32.mrb[0].mxu0
    %v817 = vadd.f32 %v353, %v816
    %v818 = vpop.f32.mrb[0].mxu0
    %819 = vdwg.mxu0
    %820 = vmatprep.subr.bf16.mxu0 0
    %821 = vmatpush1.bf16.msra.mxu0 %v667
    %822 = vmatprep.subr.bf16.mxu0 0
    %823 = vmatpush1.bf16.msra.mxu0 %v668
    %824 = vmatprep.subr.bf16.mxu0 0
    %825 = vmatpush1.bf16.msra.mxu0 %v669
    %826 = vmatprep.subr.bf16.mxu0 0
    %827 = vmatpush1.bf16.msra.mxu0 %v670
    %828 = vmatprep.subr.bf16.mxu0 0
    %829 = vmatpush1.bf16.msra.mxu0 %v671
    %830 = vmatprep.subr.bf16.mxu0 0
    %831 = vmatpush1.bf16.msra.mxu0 %v672
    %832 = vmatprep.subr.bf16.mxu0 0
    %833 = vmatpush1.bf16.msra.mxu0 %v673
    %834 = vmatprep.subr.bf16.mxu0 0
    %835 = vmatpush1.bf16.msra.mxu0 %v674
    %836 = vmatprep.subr.bf16.mxu0 0
    %837 = vmatpush1.bf16.msra.mxu0 %v675
    %838 = vmatprep.subr.bf16.mxu0 0
    %839 = vmatpush1.bf16.msra.mxu0 %v676
    %840 = vmatprep.subr.bf16.mxu0 0
    %841 = vmatpush1.bf16.msra.mxu0 %v677
    %842 = vmatprep.subr.bf16.mxu0 0
    %843 = vmatpush1.bf16.msra.mxu0 %v678
    %844 = vmatprep.subr.bf16.mxu0 0
    %845 = vmatpush1.bf16.msra.mxu0 %v679
    %846 = vmatprep.subr.bf16.mxu0 0
    %847 = vmatpush1.bf16.msra.mxu0 %v680
    %848 = vmatprep.subr.bf16.mxu0 0
    %849 = vmatpush1.bf16.msra.mxu0 %v681
    %850 = vmatprep.subr.bf16.mxu0 0
    %851 = vmatpush1.bf16.msra.mxu0 %v682
    %852 = vmatprep.mubr.bf16.mxu0 %v382
    %853 = vmatmul.mubr.bf16.gmra.mrb[0].mxu0 %v381
    %v854 = vpop.f32.mrb[0].mxu0
    %v855 = vadd.f32 %v814, %v854
    %v856 = vpop.f32.mrb[0].mxu0
    %v857 = vpop.f32.mrb[0].mxu0
    %v858 = vadd.f32 %v817, %v857
    %v859 = vpop.f32.mrb[0].mxu0
    %860 = vdwg.mxu0
    %861 = vmatprep.subr.bf16.mxu0 0
    %862 = vmatpush1.bf16.msra.mxu0 %v683
    %863 = vmatprep.subr.bf16.mxu0 0
    %864 = vmatpush1.bf16.msra.mxu0 %v684
    %865 = vmatprep.subr.bf16.mxu0 0
    %866 = vmatpush1.bf16.msra.mxu0 %v685
    %867 = vmatprep.subr.bf16.mxu0 0
    %868 = vmatpush1.bf16.msra.mxu0 %v686
    %869 = vmatprep.subr.bf16.mxu0 0
    %870 = vmatpush1.bf16.msra.mxu0 %v687
    %871 = vmatprep.subr.bf16.mxu0 0
    %872 = vmatpush1.bf16.msra.mxu0 %v688
    %873 = vmatprep.subr.bf16.mxu0 0
    %874 = vmatpush1.bf16.msra.mxu0 %v689
    %875 = vmatprep.subr.bf16.mxu0 0
    %876 = vmatpush1.bf16.msra.mxu0 %v690
    %877 = vmatprep.subr.bf16.mxu0 0
    %878 = vmatpush1.bf16.msra.mxu0 %v691
    %879 = vmatprep.subr.bf16.mxu0 0
    %880 = vmatpush1.bf16.msra.mxu0 %v692
    %881 = vmatprep.subr.bf16.mxu0 0
    %882 = vmatpush1.bf16.msra.mxu0 %v693
    %883 = vmatprep.subr.bf16.mxu0 0
    %884 = vmatpush1.bf16.msra.mxu0 %v694
    %885 = vmatprep.subr.bf16.mxu0 0
    %886 = vmatpush1.bf16.msra.mxu0 %v695
    %887 = vmatprep.subr.bf16.mxu0 0
    %888 = vmatpush1.bf16.msra.mxu0 %v696
    %889 = vmatprep.subr.bf16.mxu0 0
    %890 = vmatpush1.bf16.msra.mxu0 %v697
    %891 = vmatprep.subr.bf16.mxu0 0
    %892 = vmatpush1.bf16.msra.mxu0 %v698
    %893 = vmatprep.mubr.bf16.mxu0 %v384
    %894 = vmatmul.mubr.bf16.gmra.mrb[0].mxu0 %v383
    %v895 = vpop.f32.mrb[0].mxu0
    %v896 = vadd.f32 %v855, %v895
    %v897 = vpop.f32.mrb[0].mxu0
    %v898 = vpop.f32.mrb[0].mxu0
    %v899 = vadd.f32 %v858, %v898
    %v900 = vpop.f32.mrb[0].mxu0
    %901 = vdwg.mxu0
    %902 = vmatprep.subr.bf16.mxu0 0
    %903 = vmatpush1.bf16.msra.mxu0 %v699
    %904 = vmatprep.subr.bf16.mxu0 0
    %905 = vmatpush1.bf16.msra.mxu0 %v700
    %906 = vmatprep.subr.bf16.mxu0 0
    %907 = vmatpush1.bf16.msra.mxu0 %v701
    %908 = vmatprep.subr.bf16.mxu0 0
    %909 = vmatpush1.bf16.msra.mxu0 %v702
    %910 = vmatprep.subr.bf16.mxu0 0
    %911 = vmatpush1.bf16.msra.mxu0 %v703
    %912 = vmatprep.subr.bf16.mxu0 0
    %913 = vmatpush1.bf16.msra.mxu0 %v704
    %914 = vmatprep.subr.bf16.mxu0 0
    %915 = vmatpush1.bf16.msra.mxu0 %v705
    %916 = vmatprep.subr.bf16.mxu0 0
    %917 = vmatpush1.bf16.msra.mxu0 %v706
    %918 = vmatprep.subr.bf16.mxu0 0
    %919 = vmatpush1.bf16.msra.mxu0 %v707
    %920 = vmatprep.subr.bf16.mxu0 0
    %921 = vmatpush1.bf16.msra.mxu0 %v708
    %922 = vmatprep.subr.bf16.mxu0 0
    %923 = vmatpush1.bf16.msra.mxu0 %v709
    %924 = vmatprep.subr.bf16.mxu0 0
    %925 = vmatpush1.bf16.msra.mxu0 %v710
    %926 = vmatprep.subr.bf16.mxu0 0
    %927 = vmatpush1.bf16.msra.mxu0 %v711
    %928 = vmatprep.subr.bf16.mxu0 0
    %929 = vmatpush1.bf16.msra.mxu0 %v712
    %930 = vmatprep.subr.bf16.mxu0 0
    %931 = vmatpush1.bf16.msra.mxu0 %v713
    %932 = vmatprep.subr.bf16.mxu0 0
    %933 = vmatpush1.bf16.msra.mxu0 %v714
    %934 = vmatprep.mubr.bf16.mxu0 %v386
    %935 = vmatmul.mubr.bf16.gmra.mrb[0].mxu0 %v385
    %v936 = vpop.f32.mrb[0].mxu0
    %v937 = vadd.f32 %v896, %v936
    %v938 = vpop.f32.mrb[0].mxu0
    %v939 = vpop.f32.mrb[0].mxu0
    %v940 = vadd.f32 %v899, %v939
    %v941 = vpop.f32.mrb[0].mxu0
    %942 = vdwg.mxu0
    %v943 = vmax.f32 %v937, 0.0
    %v944 = vmax.f32 %v940, 0.0
    %v945 = vld [vmem:[#allocation5] sm:$0xff]
    %v946 = vld [vmem:[#allocation5 + $0x8] sm:$0xff]
    %v947 = vld [vmem:[#allocation5 + $0x10] sm:$0xff]
    %v948 = vld [vmem:[#allocation5 + $0x18] sm:$0xff]
    %v949 = vld [vmem:[#allocation5 + $0x20] sm:$0xff]
    %v950 = vld [vmem:[#allocation5 + $0x28] sm:$0xff]
    %v951 = vld [vmem:[#allocation5 + $0x30] sm:$0xff]
    %v952 = vld [vmem:[#allocation5 + $0x38] sm:$0xff]
    %v961 = vunpack.c.l.b16 %v945
    %v962 = vunpack.c.h.b16 %v945
    %v963 = vunpack.c.l.b16 %v946
    %v964 = vunpack.c.h.b16 %v946
    %v965 = vunpack.c.l.b16 %v947
    %v966 = vunpack.c.h.b16 %v947
    %v967 = vunpack.c.l.b16 %v948
    %v968 = vunpack.c.h.b16 %v948
    %v969 = vunpack.c.l.b16 %v949
    %v970 = vunpack.c.h.b16 %v949
    %v971 = vunpack.c.l.b16 %v950
    %v972 = vunpack.c.h.b16 %v950
    %v973 = vunpack.c.l.b16 %v951
    %v974 = vunpack.c.h.b16 %v951
    %v975 = vunpack.c.l.b16 %v952
    %v976 = vunpack.c.h.b16 %v952
    %v977 = vpack.c.b16 %v969, %v961
    %v978 = vpack.c.b16 %v970, %v962
    %v979 = vpack.c.b16 %v971, %v963
    %v980 = vpack.c.b16 %v972, %v964
    %v981 = vpack.c.b16 %v973, %v965
    %v982 = vpack.c.b16 %v974, %v966
    %v983 = vpack.c.b16 %v975, %v967
    %v984 = vpack.c.b16 %v976, %v968
    %993 = vmatprep.subr.bf16.mxu0 0
    %994 = vmatpush1.bf16.msra.mxu0 %v651
    %995 = vmatprep.subr.bf16.mxu0 0
    %996 = vmatpush1.bf16.msra.mxu0 %v652
    %997 = vmatprep.subr.bf16.mxu0 0
    %998 = vmatpush1.bf16.msra.mxu0 %v653
    %999 = vmatprep.subr.bf16.mxu0 0
    %1000 = vmatpush1.bf16.msra.mxu0 %v654
    %1001 = vmatprep.subr.bf16.mxu0 0
    %1002 = vmatpush1.bf16.msra.mxu0 %v655
    %1003 = vmatprep.subr.bf16.mxu0 0
    %1004 = vmatpush1.bf16.msra.mxu0 %v656
    %1005 = vmatprep.subr.bf16.mxu0 0
    %1006 = vmatpush1.bf16.msra.mxu0 %v657
    %1007 = vmatprep.subr.bf16.mxu0 0
    %1008 = vmatpush1.bf16.msra.mxu0 %v658
    %1009 = vmatprep.subr.bf16.mxu0 0
    %1010 = vmatpush1.bf16.msra.mxu0 %v659
    %1011 = vmatprep.subr.bf16.mxu0 0
    %1012 = vmatpush1.bf16.msra.mxu0 %v660
    %1013 = vmatprep.subr.bf16.mxu0 0
    %1014 = vmatpush1.bf16.msra.mxu0 %v661
    %1015 = vmatprep.subr.bf16.mxu0 0
    %1016 = vmatpush1.bf16.msra.mxu0 %v662
    %1017 = vmatprep.subr.bf16.mxu0 0
    %1018 = vmatpush1.bf16.msra.mxu0 %v663
    %1019 = vmatprep.subr.bf16.mxu0 0
    %1020 = vmatpush1.bf16.msra.mxu0 %v664
    %1021 = vmatprep.subr.bf16.mxu0 0
    %1022 = vmatpush1.bf16.msra.mxu0 %v665
    %1023 = vmatprep.subr.bf16.mxu0 0
    %1024 = vmatpush1.bf16.msra.mxu0 %v666
    %1025 = vmatprep.mubr.bf16.mxu0 %v978
    %1026 = vmatmul.mubr.bf16.gmra.mrb[0].mxu0 %v977
    %v1027 = vpop.f32.mrb[0].mxu0
    %v1028 = vadd.f32 %v353, %v1027
    %v1029 = vpop.f32.mrb[0].mxu0
    %v1030 = vpop.f32.mrb[0].mxu0
    %v1031 = vadd.f32 %v353, %v1030
    %v1032 = vpop.f32.mrb[0].mxu0
    %1033 = vdwg.mxu0
    %1034 = vmatprep.subr.bf16.mxu0 0
    %1035 = vmatpush1.bf16.msra.mxu0 %v667
    %1036 = vmatprep.subr.bf16.mxu0 0
    %1037 = vmatpush1.bf16.msra.mxu0 %v668
    %1038 = vmatprep.subr.bf16.mxu0 0
    %1039 = vmatpush1.bf16.msra.mxu0 %v669
    %1040 = vmatprep.subr.bf16.mxu0 0
    %1041 = vmatpush1.bf16.msra.mxu0 %v670
    %1042 = vmatprep.subr.bf16.mxu0 0
    %1043 = vmatpush1.bf16.msra.mxu0 %v671
    %1044 = vmatprep.subr.bf16.mxu0 0
    %1045 = vmatpush1.bf16.msra.mxu0 %v672
    %1046 = vmatprep.subr.bf16.mxu0 0
    %1047 = vmatpush1.bf16.msra.mxu0 %v673
    %1048 = vmatprep.subr.bf16.mxu0 0
    %1049 = vmatpush1.bf16.msra.mxu0 %v674
    %1050 = vmatprep.subr.bf16.mxu0 0
    %1051 = vmatpush1.bf16.msra.mxu0 %v675
    %1052 = vmatprep.subr.bf16.mxu0 0
    %1053 = vmatpush1.bf16.msra.mxu0 %v676
    %1054 = vmatprep.subr.bf16.mxu0 0
    %1055 = vmatpush1.bf16.msra.mxu0 %v677
    %1056 = vmatprep.subr.bf16.mxu0 0
    %1057 = vmatpush1.bf16.msra.mxu0 %v678
    %1058 = vmatprep.subr.bf16.mxu0 0
    %1059 = vmatpush1.bf16.msra.mxu0 %v679
    %1060 = vmatprep.subr.bf16.mxu0 0
    %1061 = vmatpush1.bf16.msra.mxu0 %v680
    %1062 = vmatprep.subr.bf16.mxu0 0
    %1063 = vmatpush1.bf16.msra.mxu0 %v681
    %1064 = vmatprep.subr.bf16.mxu0 0
    %1065 = vmatpush1.bf16.msra.mxu0 %v682
    %1066 = vmatprep.mubr.bf16.mxu0 %v980
    %1067 = vmatmul.mubr.bf16.gmra.mrb[0].mxu0 %v979
    %v1068 = vpop.f32.mrb[0].mxu0
    %v1069 = vadd.f32 %v1028, %v1068
    %v1070 = vpop.f32.mrb[0].mxu0
    %v1071 = vpop.f32.mrb[0].mxu0
    %v1072 = vadd.f32 %v1031, %v1071
    %v1073 = vpop.f32.mrb[0].mxu0
    %1074 = vdwg.mxu0
    %1075 = vmatprep.subr.bf16.mxu0 0
    %1076 = vmatpush1.bf16.msra.mxu0 %v683
    %1077 = vmatprep.subr.bf16.mxu0 0
    %1078 = vmatpush1.bf16.msra.mxu0 %v684
    %1079 = vmatprep.subr.bf16.mxu0 0
    %1080 = vmatpush1.bf16.msra.mxu0 %v685
    %1081 = vmatprep.subr.bf16.mxu0 0
    %1082 = vmatpush1.bf16.msra.mxu0 %v686
    %1083 = vmatprep.subr.bf16.mxu0 0
    %1084 = vmatpush1.bf16.msra.mxu0 %v687
    %1085 = vmatprep.subr.bf16.mxu0 0
    %1086 = vmatpush1.bf16.msra.mxu0 %v688
    %1087 = vmatprep.subr.bf16.mxu0 0
    %1088 = vmatpush1.bf16.msra.mxu0 %v689
    %1089 = vmatprep.subr.bf16.mxu0 0
    %1090 = vmatpush1.bf16.msra.mxu0 %v690
    %1091 = vmatprep.subr.bf16.mxu0 0
    %1092 = vmatpush1.bf16.msra.mxu0 %v691
    %1093 = vmatprep.subr.bf16.mxu0 0
    %1094 = vmatpush1.bf16.msra.mxu0 %v692
    %1095 = vmatprep.subr.bf16.mxu0 0
    %1096 = vmatpush1.bf16.msra.mxu0 %v693
    %1097 = vmatprep.subr.bf16.mxu0 0
    %1098 = vmatpush1.bf16.msra.mxu0 %v694
    %1099 = vmatprep.subr.bf16.mxu0 0
    %1100 = vmatpush1.bf16.msra.mxu0 %v695
    %1101 = vmatprep.subr.bf16.mxu0 0
    %1102 = vmatpush1.bf16.msra.mxu0 %v696
    %1103 = vmatprep.subr.bf16.mxu0 0
    %1104 = vmatpush1.bf16.msra.mxu0 %v697
    %1105 = vmatprep.subr.bf16.mxu0 0
    %1106 = vmatpush1.bf16.msra.mxu0 %v698
    %1107 = vmatprep.mubr.bf16.mxu0 %v982
    %1108 = vmatmul.mubr.bf16.gmra.mrb[0].mxu0 %v981
    %v1109 = vpop.f32.mrb[0].mxu0
    %v1110 = vadd.f32 %v1069, %v1109
    %v1111 = vpop.f32.mrb[0].mxu0
    %v1112 = vpop.f32.mrb[0].mxu0
    %v1113 = vadd.f32 %v1072, %v1112
    %v1114 = vpop.f32.mrb[0].mxu0
    %1115 = vdwg.mxu0
    %1116 = vmatprep.subr.bf16.mxu0 0
    %1117 = vmatpush1.bf16.msra.mxu0 %v699
    %1118 = vmatprep.subr.bf16.mxu0 0
    %1119 = vmatpush1.bf16.msra.mxu0 %v700
    %1120 = vmatprep.subr.bf16.mxu0 0
    %1121 = vmatpush1.bf16.msra.mxu0 %v701
    %1122 = vmatprep.subr.bf16.mxu0 0
    %1123 = vmatpush1.bf16.msra.mxu0 %v702
    %1124 = vmatprep.subr.bf16.mxu0 0
    %1125 = vmatpush1.bf16.msra.mxu0 %v703
    %1126 = vmatprep.subr.bf16.mxu0 0
    %1127 = vmatpush1.bf16.msra.mxu0 %v704
    %1128 = vmatprep.subr.bf16.mxu0 0
    %1129 = vmatpush1.bf16.msra.mxu0 %v705
    %1130 = vmatprep.subr.bf16.mxu0 0
    %1131 = vmatpush1.bf16.msra.mxu0 %v706
    %1132 = vmatprep.subr.bf16.mxu0 0
    %1133 = vmatpush1.bf16.msra.mxu0 %v707
    %1134 = vmatprep.subr.bf16.mxu0 0
    %1135 = vmatpush1.bf16.msra.mxu0 %v708
    %1136 = vmatprep.subr.bf16.mxu0 0
    %1137 = vmatpush1.bf16.msra.mxu0 %v709
    %1138 = vmatprep.subr.bf16.mxu0 0
    %1139 = vmatpush1.bf16.msra.mxu0 %v710
    %1140 = vmatprep.subr.bf16.mxu0 0
    %1141 = vmatpush1.bf16.msra.mxu0 %v711
    %1142 = vmatprep.subr.bf16.mxu0 0
    %1143 = vmatpush1.bf16.msra.mxu0 %v712
    %1144 = vmatprep.subr.bf16.mxu0 0
    %1145 = vmatpush1.bf16.msra.mxu0 %v713
    %1146 = vmatprep.subr.bf16.mxu0 0
    %1147 = vmatpush1.bf16.msra.mxu0 %v714
    %1148 = vmatprep.mubr.bf16.mxu0 %v984
    %1149 = vmatmul.mubr.bf16.gmra.mrb[0].mxu0 %v983
    %v1150 = vpop.f32.mrb[0].mxu0
    %v1151 = vadd.f32 %v1110, %v1150
    %v1152 = vpop.f32.mrb[0].mxu0
    %v1153 = vpop.f32.mrb[0].mxu0
    %v1154 = vadd.f32 %v1113, %v1153
    %v1155 = vpop.f32.mrb[0].mxu0
    %1156 = vdwg.mxu0
    %v1157 = vmax.f32 %v1151, 0.0
    %v1158 = vmax.f32 %v1154, 0.0
    %v1159 = vpack.c.bf16 %v944, %v943
    %v1160 = vld [vmem:[#allocation11] sm:$0xff]
    %v1161 = vld [vmem:[#allocation11 + $0x8] sm:$0xff]
    %v1162 = vld [vmem:[#allocation11 + $0x10] sm:$0xff]
    %v1163 = vld [vmem:[#allocation11 + $0x18] sm:$0xff]
    %v1164 = vpack.c.bf16 %v1158, %v1157
    %v1165 = vld [vmem:[#allocation13] sm:$0xff]
    %v1166 = vld [vmem:[#allocation13 + $0x8] sm:$0xff]
    %v1167 = vld [vmem:[#allocation13 + $0x10] sm:$0xff]
    %v1168 = vld [vmem:[#allocation13 + $0x18] sm:$0xff]
    %v1173 = vunpack.c.l.b16 %v1165
    %v1174 = vunpack.c.h.b16 %v1165
    %v1175 = vunpack.c.l.b16 %v1166
    %v1176 = vunpack.c.h.b16 %v1166
    %v1177 = vunpack.c.l.b16 %v1167
    %v1178 = vunpack.c.h.b16 %v1167
    %v1179 = vunpack.c.l.b16 %v1168
    %v1180 = vunpack.c.h.b16 %v1168
    %v1181 = vpack.c.b16 %v1175, %v1173
    %v1182 = vpack.c.b16 %v1176, %v1174
    %v1183 = vpack.c.b16 %v1179, %v1177
    %v1184 = vpack.c.b16 %v1180, %v1178
    %vm1189 = vcmask 261120
    %v1191 = vsel %vm1189, %v1164, 0
    %1193 = vmatprep.subr.bf16.mxu0 %v1182
    %1194 = vmatpush1.bf16.msra.mxu0 %v1181
    %1195 = vmatprep.subr.bf16.mxu0 %v1184
    %1196 = vmatpush1.bf16.msra.mxu0 %v1183
    %1197 = vmatprep.subr.bf16.mxu0 0
    %1198 = vmatpush1.bf16.msra.mxu0 0
    %1199 = vmatprep.subr.bf16.mxu0 0
    %1200 = vmatpush1.bf16.msra.mxu0 0
    %1201 = vmatprep.subr.bf16.mxu0 0
    %1202 = vmatpush1.bf16.msra.mxu0 0
    %1203 = vmatprep.subr.bf16.mxu0 0
    %1204 = vmatpush1.bf16.msra.mxu0 0
    %1205 = vmatprep.subr.bf16.mxu0 0
    %1206 = vmatpush1.bf16.msra.mxu0 0
    %1207 = vmatprep.subr.bf16.mxu0 0
    %1208 = vmatpush1.bf16.msra.mxu0 0
    %1209 = vmatprep.subr.bf16.mxu0 0
    %1210 = vmatpush1.bf16.msra.mxu0 0
    %1211 = vmatprep.subr.bf16.mxu0 0
    %1212 = vmatpush1.bf16.msra.mxu0 0
    %1213 = vmatprep.subr.bf16.mxu0 0
    %1214 = vmatpush1.bf16.msra.mxu0 0
    %1215 = vmatprep.subr.bf16.mxu0 0
    %1216 = vmatpush1.bf16.msra.mxu0 0
    %1217 = vmatprep.subr.bf16.mxu0 0
    %1218 = vmatpush1.bf16.msra.mxu0 0
    %1219 = vmatprep.subr.bf16.mxu0 0
    %1220 = vmatpush1.bf16.msra.mxu0 0
    %1221 = vmatprep.subr.bf16.mxu0 0
    %1222 = vmatpush1.bf16.msra.mxu0 0
    %1223 = vmatprep.subr.bf16.mxu0 0
    %1224 = vmatpush1.bf16.msra.mxu0 0
    %1225 = vmatprep.mubr.bf16.mxu0 0
    %1226 = vmatmul.mubr.bf16.gmra.mrb[0].mxu0 %v1191
    %v1227 = vpop.f32.mrb[0].mxu0
    %v1228 = vadd.f32 0.0, %v1227
    %v1229 = vpop.f32.mrb[0].mxu0
    %v1230 = vadd.f32 0.0, %v1229
    %v1231 = vpop.f32.mrb[0].mxu0
    %v1232 = vadd.f32 0.0, %v1231
    %v1233 = vpop.f32.mrb[0].mxu0
    %v1234 = vadd.f32 0.0, %v1233
    %1235 = vdwg.mxu0
    %v1240 = vunpack.c.l.b16 %v1160
    %v1241 = vunpack.c.h.b16 %v1160
    %v1242 = vunpack.c.l.b16 %v1161
    %v1243 = vunpack.c.h.b16 %v1161
    %v1244 = vunpack.c.l.b16 %v1162
    %v1245 = vunpack.c.h.b16 %v1162
    %v1246 = vunpack.c.l.b16 %v1163
    %v1247 = vunpack.c.h.b16 %v1163
    %v1248 = vpack.c.b16 %v1242, %v1240
    %v1249 = vpack.c.b16 %v1243, %v1241
    %v1250 = vpack.c.b16 %v1246, %v1244
    %v1251 = vpack.c.b16 %v1247, %v1245
    %v1257 = vsel %vm1189, %v1159, 0
    %1259 = vmatprep.subr.bf16.mxu0 %v1249
    %1260 = vmatpush1.bf16.msra.mxu0 %v1248
    %1261 = vmatprep.subr.bf16.mxu0 %v1251
    %1262 = vmatpush1.bf16.msra.mxu0 %v1250
    %1263 = vmatprep.subr.bf16.mxu0 0
    %1264 = vmatpush1.bf16.msra.mxu0 0
    %1265 = vmatprep.subr.bf16.mxu0 0
    %1266 = vmatpush1.bf16.msra.mxu0 0
    %1267 = vmatprep.subr.bf16.mxu0 0
    %1268 = vmatpush1.bf16.msra.mxu0 0
    %1269 = vmatprep.subr.bf16.mxu0 0
    %1270 = vmatpush1.bf16.msra.mxu0 0
    %1271 = vmatprep.subr.bf16.mxu0 0
    %1272 = vmatpush1.bf16.msra.mxu0 0
    %1273 = vmatprep.subr.bf16.mxu0 0
    %1274 = vmatpush1.bf16.msra.mxu0 0
    %1275 = vmatprep.subr.bf16.mxu0 0
    %1276 = vmatpush1.bf16.msra.mxu0 0
    %1277 = vmatprep.subr.bf16.mxu0 0
    %1278 = vmatpush1.bf16.msra.mxu0 0
    %1279 = vmatprep.subr.bf16.mxu0 0
    %1280 = vmatpush1.bf16.msra.mxu0 0
    %1281 = vmatprep.subr.bf16.mxu0 0
    %1282 = vmatpush1.bf16.msra.mxu0 0
    %1283 = vmatprep.subr.bf16.mxu0 0
    %1284 = vmatpush1.bf16.msra.mxu0 0
    %1285 = vmatprep.subr.bf16.mxu0 0
    %1286 = vmatpush1.bf16.msra.mxu0 0
    %1287 = vmatprep.subr.bf16.mxu0 0
    %1288 = vmatpush1.bf16.msra.mxu0 0
    %1289 = vmatprep.subr.bf16.mxu0 0
    %1290 = vmatpush1.bf16.msra.mxu0 0
    %1291 = vmatprep.mubr.bf16.mxu0 0
    %1292 = vmatmul.mubr.bf16.gmra.mrb[0].mxu0 %v1257
    %v1293 = vpop.f32.mrb[0].mxu0
    %v1294 = vadd.f32 %v1228, %v1293
    %v1295 = vpop.f32.mrb[0].mxu0
    %v1296 = vadd.f32 %v1230, %v1295
    %v1297 = vpop.f32.mrb[0].mxu0
    %v1298 = vadd.f32 %v1232, %v1297
    %v1299 = vpop.f32.mrb[0].mxu0
    %v1300 = vadd.f32 %v1234, %v1299
    %1301 = vdwg.mxu0
    %v1302 = vld [vmem:[#allocation14] sm:$0x3]
    %v1304 = vlaneseq
    %v1305 = vshrl.u32 %v1304, 7
    %v1306 = vsub.s32 0, %v1305
    %v1307 = vrot.slane %v1302, %v1306
    %v1308 = vlaneseq
    %v1309 = vshrl.u32 %v1308, 7
    %v1310 = vsub.s32 1, %v1309
    %v1311 = vrot.slane %v1302, %v1310
    %v1314 = vadd.f32 %v1294, %v1307
    %v1315 = vadd.f32 %v1296, %v1311
    %v1316 = vadd.f32 %v1298, %v1307
    %v1317 = vadd.f32 %v1300, %v1311
    %v1318 = vtanh.pop %v1314
    %v1319 = vtanh.pop %v1315
    %v1320 = vtanh.pop %v1316
    %v1321 = vtanh.pop %v1317
    %v1322 = vpack.c.bf16 %v1320, %v1318
    %v1323 = vpack.c.bf16 %v1321, %v1319
    %v1324 = vld [vmem:[#allocation16] sm:$0xff]
    %v1325 = vld [vmem:[#allocation16 + $0x8] sm:$0xff]
    %v1326 = vld [vmem:[#allocation16 + $0x10] sm:$0xff]
    %v1327 = vld [vmem:[#allocation16 + $0x18] sm:$0xff]
    %v1328 = vld [vmem:[#allocation16 + $0x20] sm:$0xff]
    %v1329 = vld [vmem:[#allocation16 + $0x28] sm:$0xff]
    %v1330 = vld [vmem:[#allocation16 + $0x30] sm:$0xff]
    %v1331 = vld [vmem:[#allocation16 + $0x38] sm:$0xff]
    %v1332 = vld [vmem:[#allocation16 + $0x40] sm:$0xff]
    %v1333 = vld [vmem:[#allocation16 + $0x48] sm:$0xff]
    %v1334 = vld [vmem:[#allocation16 + $0x50] sm:$0xff]
    %v1335 = vld [vmem:[#allocation16 + $0x58] sm:$0xff]
    %v1336 = vld [vmem:[#allocation16 + $0x60] sm:$0xff]
    %v1337 = vld [vmem:[#allocation16 + $0x68] sm:$0xff]
    %v1338 = vld [vmem:[#allocation16 + $0x70] sm:$0xff]
    %v1339 = vld [vmem:[#allocation16 + $0x78] sm:$0xff]
    %v1340 = vld [vmem:[#allocation16 + $0x80] sm:$0xff]
    %v1341 = vld [vmem:[#allocation16 + $0x88] sm:$0xff]
    %v1342 = vld [vmem:[#allocation16 + $0x90] sm:$0xff]
    %v1343 = vld [vmem:[#allocation16 + $0x98] sm:$0xff]
    %v1344 = vld [vmem:[#allocation16 + $0xa0] sm:$0xff]
    %v1345 = vld [vmem:[#allocation16 + $0xa8] sm:$0xff]
    %v1346 = vld [vmem:[#allocation16 + $0xb0] sm:$0xff]
    %v1347 = vld [vmem:[#allocation16 + $0xb8] sm:$0xff]
    %v1348 = vld [vmem:[#allocation16 + $0xc0] sm:$0xff]
    %v1349 = vld [vmem:[#allocation16 + $0xc8] sm:$0xff]
    %v1350 = vld [vmem:[#allocation16 + $0xd0] sm:$0xff]
    %v1351 = vld [vmem:[#allocation16 + $0xd8] sm:$0xff]
    %v1352 = vld [vmem:[#allocation16 + $0xe0] sm:$0xff]
    %v1353 = vld [vmem:[#allocation16 + $0xe8] sm:$0xff]
    %v1354 = vld [vmem:[#allocation16 + $0xf0] sm:$0xff]
    %v1355 = vld [vmem:[#allocation16 + $0xf8] sm:$0xff]
    %v1356 = vld [vmem:[#allocation17] sm:$0x3]
    %v1358 = vlaneseq
    %v1359 = vshrl.u32 %v1358, 7
    %v1360 = vsub.s32 0, %v1359
    %v1361 = vrot.slane %v1356, %v1360
    %v1362 = vlaneseq
    %v1363 = vshrl.u32 %v1362, 7
    %v1364 = vsub.s32 1, %v1363
    %v1365 = vrot.slane %v1356, %v1364
    %v1400 = vunpack.c.l.b16 %v1324
    %v1401 = vunpack.c.h.b16 %v1324
    %v1402 = vunpack.c.l.b16 %v1325
    %v1403 = vunpack.c.h.b16 %v1325
    %v1404 = vunpack.c.l.b16 %v1326
    %v1405 = vunpack.c.h.b16 %v1326
    %v1406 = vunpack.c.l.b16 %v1327
    %v1407 = vunpack.c.h.b16 %v1327
    %v1408 = vunpack.c.l.b16 %v1328
    %v1409 = vunpack.c.h.b16 %v1328
    %v1410 = vunpack.c.l.b16 %v1329
    %v1411 = vunpack.c.h.b16 %v1329
    %v1412 = vunpack.c.l.b16 %v1330
    %v1413 = vunpack.c.h.b16 %v1330
    %v1414 = vunpack.c.l.b16 %v1331
    %v1415 = vunpack.c.h.b16 %v1331
    %v1416 = vunpack.c.l.b16 %v1332
    %v1417 = vunpack.c.h.b16 %v1332
    %v1418 = vunpack.c.l.b16 %v1333
    %v1419 = vunpack.c.h.b16 %v1333
    %v1420 = vunpack.c.l.b16 %v1334
    %v1421 = vunpack.c.h.b16 %v1334
    %v1422 = vunpack.c.l.b16 %v1335
    %v1423 = vunpack.c.h.b16 %v1335
    %v1424 = vunpack.c.l.b16 %v1336
    %v1425 = vunpack.c.h.b16 %v1336
    %v1426 = vunpack.c.l.b16 %v1337
    %v1427 = vunpack.c.h.b16 %v1337
    %v1428 = vunpack.c.l.b16 %v1338
    %v1429 = vunpack.c.h.b16 %v1338
    %v1430 = vunpack.c.l.b16 %v1339
    %v1431 = vunpack.c.h.b16 %v1339
    %v1432 = vunpack.c.l.b16 %v1340
    %v1433 = vunpack.c.h.b16 %v1340
    %v1434 = vunpack.c.l.b16 %v1341
    %v1435 = vunpack.c.h.b16 %v1341
    %v1436 = vunpack.c.l.b16 %v1342
    %v1437 = vunpack.c.h.b16 %v1342
    %v1438 = vunpack.c.l.b16 %v1343
    %v1439 = vunpack.c.h.b16 %v1343
    %v1440 = vunpack.c.l.b16 %v1344
    %v1441 = vunpack.c.h.b16 %v1344
    %v1442 = vunpack.c.l.b16 %v1345
    %v1443 = vunpack.c.h.b16 %v1345
    %v1444 = vunpack.c.l.b16 %v1346
    %v1445 = vunpack.c.h.b16 %v1346
    %v1446 = vunpack.c.l.b16 %v1347
    %v1447 = vunpack.c.h.b16 %v1347
    %v1448 = vunpack.c.l.b16 %v1348
    %v1449 = vunpack.c.h.b16 %v1348
    %v1450 = vunpack.c.l.b16 %v1349
    %v1451 = vunpack.c.h.b16 %v1349
    %v1452 = vunpack.c.l.b16 %v1350
    %v1453 = vunpack.c.h.b16 %v1350
    %v1454 = vunpack.c.l.b16 %v1351
    %v1455 = vunpack.c.h.b16 %v1351
    %v1456 = vunpack.c.l.b16 %v1352
    %v1457 = vunpack.c.h.b16 %v1352
    %v1458 = vunpack.c.l.b16 %v1353
    %v1459 = vunpack.c.h.b16 %v1353
    %v1460 = vunpack.c.l.b16 %v1354
    %v1461 = vunpack.c.h.b16 %v1354
    %v1462 = vunpack.c.l.b16 %v1355
    %v1463 = vunpack.c.h.b16 %v1355
    %v1464 = vpack.c.b16 %v1402, %v1400
    %v1465 = vpack.c.b16 %v1403, %v1401
    %v1466 = vpack.c.b16 %v1406, %v1404
    %v1467 = vpack.c.b16 %v1407, %v1405
    %v1468 = vpack.c.b16 %v1410, %v1408
    %v1469 = vpack.c.b16 %v1411, %v1409
    %v1470 = vpack.c.b16 %v1414, %v1412
    %v1471 = vpack.c.b16 %v1415, %v1413
    %v1472 = vpack.c.b16 %v1418, %v1416
    %v1473 = vpack.c.b16 %v1419, %v1417
    %v1474 = vpack.c.b16 %v1422, %v1420
    %v1475 = vpack.c.b16 %v1423, %v1421
    %v1476 = vpack.c.b16 %v1426, %v1424
    %v1477 = vpack.c.b16 %v1427, %v1425
    %v1478 = vpack.c.b16 %v1430, %v1428
    %v1479 = vpack.c.b16 %v1431, %v1429
    %v1480 = vpack.c.b16 %v1434, %v1432
    %v1481 = vpack.c.b16 %v1435, %v1433
    %v1482 = vpack.c.b16 %v1438, %v1436
    %v1483 = vpack.c.b16 %v1439, %v1437
    %v1484 = vpack.c.b16 %v1442, %v1440
    %v1485 = vpack.c.b16 %v1443, %v1441
    %v1486 = vpack.c.b16 %v1446, %v1444
    %v1487 = vpack.c.b16 %v1447, %v1445
    %v1488 = vpack.c.b16 %v1450, %v1448
    %v1489 = vpack.c.b16 %v1451, %v1449
    %v1490 = vpack.c.b16 %v1454, %v1452
    %v1491 = vpack.c.b16 %v1455, %v1453
    %v1492 = vpack.c.b16 %v1458, %v1456
    %v1493 = vpack.c.b16 %v1459, %v1457
    %v1494 = vpack.c.b16 %v1462, %v1460
    %v1495 = vpack.c.b16 %v1463, %v1461
    %1528 = vmatprep.subr.bf16.mxu0 %v1465
    %1529 = vmatpush1.bf16.msra.mxu0 %v1464
    %1530 = vmatprep.subr.bf16.mxu0 %v1467
    %1531 = vmatpush1.bf16.msra.mxu0 %v1466
    %1532 = vmatprep.subr.bf16.mxu0 %v1469
    %1533 = vmatpush1.bf16.msra.mxu0 %v1468
    %1534 = vmatprep.subr.bf16.mxu0 %v1471
    %1535 = vmatpush1.bf16.msra.mxu0 %v1470
    %1536 = vmatprep.subr.bf16.mxu0 %v1473
    %1537 = vmatpush1.bf16.msra.mxu0 %v1472
    %1538 = vmatprep.subr.bf16.mxu0 %v1475
    %1539 = vmatpush1.bf16.msra.mxu0 %v1474
    %1540 = vmatprep.subr.bf16.mxu0 %v1477
    %1541 = vmatpush1.bf16.msra.mxu0 %v1476
    %1542 = vmatprep.subr.bf16.mxu0 %v1479
    %1543 = vmatpush1.bf16.msra.mxu0 %v1478
    %1544 = vmatprep.subr.bf16.mxu0 %v1481
    %1545 = vmatpush1.bf16.msra.mxu0 %v1480
    %1546 = vmatprep.subr.bf16.mxu0 %v1483
    %1547 = vmatpush1.bf16.msra.mxu0 %v1482
    %1548 = vmatprep.subr.bf16.mxu0 %v1485
    %1549 = vmatpush1.bf16.msra.mxu0 %v1484
    %1550 = vmatprep.subr.bf16.mxu0 %v1487
    %1551 = vmatpush1.bf16.msra.mxu0 %v1486
    %1552 = vmatprep.subr.bf16.mxu0 %v1489
    %1553 = vmatpush1.bf16.msra.mxu0 %v1488
    %1554 = vmatprep.subr.bf16.mxu0 %v1491
    %1555 = vmatpush1.bf16.msra.mxu0 %v1490
    %1556 = vmatprep.subr.bf16.mxu0 %v1493
    %1557 = vmatpush1.bf16.msra.mxu0 %v1492
    %1558 = vmatprep.subr.bf16.mxu0 %v1495
    %1559 = vmatpush1.bf16.msra.mxu0 %v1494
    %1560 = vmatprep.mubr.bf16.mxu0 %v1323
    %1561 = vmatmul.mubr.bf16.gmra.mrb[0].mxu0 %v1322
    %v1562 = vpop.f32.mrb[0].mxu0
    %v1563 = vadd.f32 %v1361, %v1562
    %v1564 = vpop.f32.mrb[0].mxu0
    %v1565 = vadd.f32 %v1365, %v1564
    %v1566 = vpop.f32.mrb[0].mxu0
    %v1567 = vadd.f32 %v1361, %v1566
    %v1568 = vpop.f32.mrb[0].mxu0
    %v1569 = vadd.f32 %v1365, %v1568
    %1570 = vdwg.mxu0
    %v1571 = vtanh.pop %v1563
    %v1572 = vtanh.pop %v1565
    %v1573 = vtanh.pop %v1567
    %v1574 = vtanh.pop %v1569
    %v1575 = vld [vmem:[#allocation7] sm:$0xff]
    %v1576 = vld [vmem:[#allocation7 + $0x8] sm:$0xff]
    %v1577 = vld [vmem:[#allocation20] ss:$4 sm:$0x3]
    %1579 = vset.pattern.permute.xlu0 0
    %1580 = vperm.xlu0 %1579, %v1575
    %v1581 = vpop.permute.xlu0 %1580
    %1584 = vset.pattern.permute.xlu0 0
    %1585 = vperm.xlu0 %1584, %v1576
    %v1586 = vpop.permute.xlu0 %1585
    %v1589 = vlaneseq
    %v1590 = vshrl.u32 %v1589, 7
    %v1591 = vsub.s32 0, %v1590
    %v1592 = vrot.slane %v1577, %v1591
    %v1593 = vlaneseq
    %v1594 = vshrl.u32 %v1593, 7
    %v1595 = vsub.s32 1, %v1594
    %v1596 = vrot.slane %v1577, %v1595
    %v1599 = vmul.f32 %v1581, %v1592
    %v1600 = vmul.f32 %v1581, %v1596
    %v1601 = vmul.f32 %v1586, %v1592
    %v1602 = vmul.f32 %v1586, %v1596
    %s1603 = scalar_lea.vmem [#allocation20], 1
    %v1604 = vld [vmem:[%s1603] ss:$4 sm:$0x3]
    %1605 = vset.pattern.permute.xlu0 1
    %1606 = vperm.xlu0 %1605, %v1575
    %v1607 = vpop.permute.xlu0 %1606
    %1609 = vset.pattern.permute.xlu0 1
    %1610 = vperm.xlu0 %1609, %v1576
    %v1611 = vpop.permute.xlu0 %1610
    %v1614 = vlaneseq
    %v1615 = vshrl.u32 %v1614, 7
    %v1616 = vsub.s32 0, %v1615
    %v1617 = vrot.slane %v1604, %v1616
    %v1618 = vlaneseq
    %v1619 = vshrl.u32 %v1618, 7
    %v1620 = vsub.s32 1, %v1619
    %v1621 = vrot.slane %v1604, %v1620
    %v1624 = vmul.f32 %v1607, %v1617
    %v1625 = vmul.f32 %v1607, %v1621
    %v1626 = vmul.f32 %v1611, %v1617
    %v1627 = vmul.f32 %v1611, %v1621
    %v1628 = vadd.f32 %v1599, %v1624
    %v1629 = vadd.f32 %v1600, %v1625
    %v1630 = vadd.f32 %v1601, %v1626
    %v1631 = vadd.f32 %v1602, %v1627
    %s1632 = scalar_lea.vmem [#allocation20], 2
    %v1633 = vld [vmem:[%s1632] ss:$4 sm:$0x3]
    %1634 = vset.pattern.permute.xlu0 2
    %1635 = vperm.xlu0 %1634, %v1575
    %v1636 = vpop.permute.xlu0 %1635
    %1638 = vset.pattern.permute.xlu0 2
    %1639 = vperm.xlu0 %1638, %v1576
    %v1640 = vpop.permute.xlu0 %1639
    %v1643 = vlaneseq
    %v1644 = vshrl.u32 %v1643, 7
    %v1645 = vsub.s32 0, %v1644
    %v1646 = vrot.slane %v1633, %v1645
    %v1647 = vlaneseq
    %v1648 = vshrl.u32 %v1647, 7
    %v1649 = vsub.s32 1, %v1648
    %v1650 = vrot.slane %v1633, %v1649
    %v1653 = vmul.f32 %v1636, %v1646
    %v1654 = vmul.f32 %v1636, %v1650
    %v1655 = vmul.f32 %v1640, %v1646
    %v1656 = vmul.f32 %v1640, %v1650
    %v1657 = vadd.f32 %v1628, %v1653
    %v1658 = vadd.f32 %v1629, %v1654
    %v1659 = vadd.f32 %v1630, %v1655
    %v1660 = vadd.f32 %v1631, %v1656
    %v1661 = vpack.c.bf16 %v1573, %v1571
    %v1662 = vpack.c.bf16 %v1574, %v1572
    %v1663 = vld [vmem:[#allocation19] sm:$0xff]
    %v1664 = vld [vmem:[#allocation19 + $0x8] sm:$0xff]
    %v1665 = vld [vmem:[#allocation19 + $0x10] sm:$0xff]
    %v1666 = vld [vmem:[#allocation19 + $0x18] sm:$0xff]
    %v1667 = vld [vmem:[#allocation19 + $0x20] sm:$0xff]
    %v1668 = vld [vmem:[#allocation19 + $0x28] sm:$0xff]
    %v1669 = vld [vmem:[#allocation19 + $0x30] sm:$0xff]
    %v1670 = vld [vmem:[#allocation19 + $0x38] sm:$0xff]
    %v1671 = vld [vmem:[#allocation19 + $0x40] sm:$0xff]
    %v1672 = vld [vmem:[#allocation19 + $0x48] sm:$0xff]
    %v1673 = vld [vmem:[#allocation19 + $0x50] sm:$0xff]
    %v1674 = vld [vmem:[#allocation19 + $0x58] sm:$0xff]
    %v1675 = vld [vmem:[#allocation19 + $0x60] sm:$0xff]
    %v1676 = vld [vmem:[#allocation19 + $0x68] sm:$0xff]
    %v1677 = vld [vmem:[#allocation19 + $0x70] sm:$0xff]
    %v1678 = vld [vmem:[#allocation19 + $0x78] sm:$0xff]
    %v1679 = vld [vmem:[#allocation19 + $0x80] sm:$0xff]
    %v1680 = vld [vmem:[#allocation19 + $0x88] sm:$0xff]
    %v1681 = vld [vmem:[#allocation19 + $0x90] sm:$0xff]
    %v1682 = vld [vmem:[#allocation19 + $0x98] sm:$0xff]
    %v1683 = vld [vmem:[#allocation19 + $0xa0] sm:$0xff]
    %v1684 = vld [vmem:[#allocation19 + $0xa8] sm:$0xff]
    %v1685 = vld [vmem:[#allocation19 + $0xb0] sm:$0xff]
    %v1686 = vld [vmem:[#allocation19 + $0xb8] sm:$0xff]
    %v1687 = vld [vmem:[#allocation19 + $0xc0] sm:$0xff]
    %v1688 = vld [vmem:[#allocation19 + $0xc8] sm:$0xff]
    %v1689 = vld [vmem:[#allocation19 + $0xd0] sm:$0xff]
    %v1690 = vld [vmem:[#allocation19 + $0xd8] sm:$0xff]
    %v1691 = vld [vmem:[#allocation19 + $0xe0] sm:$0xff]
    %v1692 = vld [vmem:[#allocation19 + $0xe8] sm:$0xff]
    %v1693 = vld [vmem:[#allocation19 + $0xf0] sm:$0xff]
    %v1694 = vld [vmem:[#allocation19 + $0xf8] sm:$0xff]
    %v1727 = vunpack.c.l.b16 %v1663
    %v1728 = vunpack.c.h.b16 %v1663
    %v1729 = vunpack.c.l.b16 %v1664
    %v1730 = vunpack.c.h.b16 %v1664
    %v1731 = vunpack.c.l.b16 %v1665
    %v1732 = vunpack.c.h.b16 %v1665
    %v1733 = vunpack.c.l.b16 %v1666
    %v1734 = vunpack.c.h.b16 %v1666
    %v1735 = vunpack.c.l.b16 %v1667
    %v1736 = vunpack.c.h.b16 %v1667
    %v1737 = vunpack.c.l.b16 %v1668
    %v1738 = vunpack.c.h.b16 %v1668
    %v1739 = vunpack.c.l.b16 %v1669
    %v1740 = vunpack.c.h.b16 %v1669
    %v1741 = vunpack.c.l.b16 %v1670
    %v1742 = vunpack.c.h.b16 %v1670
    %v1743 = vunpack.c.l.b16 %v1671
    %v1744 = vunpack.c.h.b16 %v1671
    %v1745 = vunpack.c.l.b16 %v1672
    %v1746 = vunpack.c.h.b16 %v1672
    %v1747 = vunpack.c.l.b16 %v1673
    %v1748 = vunpack.c.h.b16 %v1673
    %v1749 = vunpack.c.l.b16 %v1674
    %v1750 = vunpack.c.h.b16 %v1674
    %v1751 = vunpack.c.l.b16 %v1675
    %v1752 = vunpack.c.h.b16 %v1675
    %v1753 = vunpack.c.l.b16 %v1676
    %v1754 = vunpack.c.h.b16 %v1676
    %v1755 = vunpack.c.l.b16 %v1677
    %v1756 = vunpack.c.h.b16 %v1677
    %v1757 = vunpack.c.l.b16 %v1678
    %v1758 = vunpack.c.h.b16 %v1678
    %v1759 = vunpack.c.l.b16 %v1679
    %v1760 = vunpack.c.h.b16 %v1679
    %v1761 = vunpack.c.l.b16 %v1680
    %v1762 = vunpack.c.h.b16 %v1680
    %v1763 = vunpack.c.l.b16 %v1681
    %v1764 = vunpack.c.h.b16 %v1681
    %v1765 = vunpack.c.l.b16 %v1682
    %v1766 = vunpack.c.h.b16 %v1682
    %v1767 = vunpack.c.l.b16 %v1683
    %v1768 = vunpack.c.h.b16 %v1683
    %v1769 = vunpack.c.l.b16 %v1684
    %v1770 = vunpack.c.h.b16 %v1684
    %v1771 = vunpack.c.l.b16 %v1685
    %v1772 = vunpack.c.h.b16 %v1685
    %v1773 = vunpack.c.l.b16 %v1686
    %v1774 = vunpack.c.h.b16 %v1686
    %v1775 = vunpack.c.l.b16 %v1687
    %v1776 = vunpack.c.h.b16 %v1687
    %v1777 = vunpack.c.l.b16 %v1688
    %v1778 = vunpack.c.h.b16 %v1688
    %v1779 = vunpack.c.l.b16 %v1689
    %v1780 = vunpack.c.h.b16 %v1689
    %v1781 = vunpack.c.l.b16 %v1690
    %v1782 = vunpack.c.h.b16 %v1690
    %v1783 = vunpack.c.l.b16 %v1691
    %v1784 = vunpack.c.h.b16 %v1691
    %v1785 = vunpack.c.l.b16 %v1692
    %v1786 = vunpack.c.h.b16 %v1692
    %v1787 = vunpack.c.l.b16 %v1693
    %v1788 = vunpack.c.h.b16 %v1693
    %v1789 = vunpack.c.l.b16 %v1694
    %v1790 = vunpack.c.h.b16 %v1694
    %v1791 = vpack.c.b16 %v1729, %v1727
    %v1792 = vpack.c.b16 %v1730, %v1728
    %v1793 = vpack.c.b16 %v1733, %v1731
    %v1794 = vpack.c.b16 %v1734, %v1732
    %v1795 = vpack.c.b16 %v1737, %v1735
    %v1796 = vpack.c.b16 %v1738, %v1736
    %v1797 = vpack.c.b16 %v1741, %v1739
    %v1798 = vpack.c.b16 %v1742, %v1740
    %v1799 = vpack.c.b16 %v1745, %v1743
    %v1800 = vpack.c.b16 %v1746, %v1744
    %v1801 = vpack.c.b16 %v1749, %v1747
    %v1802 = vpack.c.b16 %v1750, %v1748
    %v1803 = vpack.c.b16 %v1753, %v1751
    %v1804 = vpack.c.b16 %v1754, %v1752
    %v1805 = vpack.c.b16 %v1757, %v1755
    %v1806 = vpack.c.b16 %v1758, %v1756
    %v1807 = vpack.c.b16 %v1761, %v1759
    %v1808 = vpack.c.b16 %v1762, %v1760
    %v1809 = vpack.c.b16 %v1765, %v1763
    %v1810 = vpack.c.b16 %v1766, %v1764
    %v1811 = vpack.c.b16 %v1769, %v1767
    %v1812 = vpack.c.b16 %v1770, %v1768
    %v1813 = vpack.c.b16 %v1773, %v1771
    %v1814 = vpack.c.b16 %v1774, %v1772
    %v1815 = vpack.c.b16 %v1777, %v1775
    %v1816 = vpack.c.b16 %v1778, %v1776
    %v1817 = vpack.c.b16 %v1781, %v1779
    %v1818 = vpack.c.b16 %v1782, %v1780
    %v1819 = vpack.c.b16 %v1785, %v1783
    %v1820 = vpack.c.b16 %v1786, %v1784
    %v1821 = vpack.c.b16 %v1789, %v1787
    %v1822 = vpack.c.b16 %v1790, %v1788
    %1855 = vmatprep.subr.bf16.mxu0 %v1792
    %1856 = vmatpush1.bf16.msra.mxu0 %v1791
    %1857 = vmatprep.subr.bf16.mxu0 %v1794
    %1858 = vmatpush1.bf16.msra.mxu0 %v1793
    %1859 = vmatprep.subr.bf16.mxu0 %v1796
    %1860 = vmatpush1.bf16.msra.mxu0 %v1795
    %1861 = vmatprep.subr.bf16.mxu0 %v1798
    %1862 = vmatpush1.bf16.msra.mxu0 %v1797
    %1863 = vmatprep.subr.bf16.mxu0 %v1800
    %1864 = vmatpush1.bf16.msra.mxu0 %v1799
    %1865 = vmatprep.subr.bf16.mxu0 %v1802
    %1866 = vmatpush1.bf16.msra.mxu0 %v1801
    %1867 = vmatprep.subr.bf16.mxu0 %v1804
    %1868 = vmatpush1.bf16.msra.mxu0 %v1803
    %1869 = vmatprep.subr.bf16.mxu0 %v1806
    %1870 = vmatpush1.bf16.msra.mxu0 %v1805
    %1871 = vmatprep.subr.bf16.mxu0 %v1808
    %1872 = vmatpush1.bf16.msra.mxu0 %v1807
    %1873 = vmatprep.subr.bf16.mxu0 %v1810
    %1874 = vmatpush1.bf16.msra.mxu0 %v1809
    %1875 = vmatprep.subr.bf16.mxu0 %v1812
    %1876 = vmatpush1.bf16.msra.mxu0 %v1811
    %1877 = vmatprep.subr.bf16.mxu0 %v1814
    %1878 = vmatpush1.bf16.msra.mxu0 %v1813
    %1879 = vmatprep.subr.bf16.mxu0 %v1816
    %1880 = vmatpush1.bf16.msra.mxu0 %v1815
    %1881 = vmatprep.subr.bf16.mxu0 %v1818
    %1882 = vmatpush1.bf16.msra.mxu0 %v1817
    %1883 = vmatprep.subr.bf16.mxu0 %v1820
    %1884 = vmatpush1.bf16.msra.mxu0 %v1819
    %1885 = vmatprep.subr.bf16.mxu0 %v1822
    %1886 = vmatpush1.bf16.msra.mxu0 %v1821
    %1887 = vmatprep.mubr.bf16.mxu0 %v1662
    %1888 = vmatmul.mubr.bf16.gmra.mrb[0].mxu0 %v1661
    %v1889 = vpop.f32.mrb[0].mxu0
    %v1890 = vadd.f32 %v1657, %v1889
    %v1891 = vpop.f32.mrb[0].mxu0
    %v1892 = vadd.f32 %v1658, %v1891
    %v1893 = vpop.f32.mrb[0].mxu0
    %v1894 = vadd.f32 %v1659, %v1893
    %v1895 = vpop.f32.mrb[0].mxu0
    %v1896 = vadd.f32 %v1660, %v1895
    %1897 = vdwg.mxu0
    %v1898 = vld [vmem:[#allocation22] sm:$0x3]
    %v1900 = vlaneseq
    %v1901 = vshrl.u32 %v1900, 7
    %v1902 = vsub.s32 0, %v1901
    %v1903 = vrot.slane %v1898, %v1902
    %v1904 = vlaneseq
    %v1905 = vshrl.u32 %v1904, 7
    %v1906 = vsub.s32 1, %v1905
    %v1907 = vrot.slane %v1898, %v1906
    %v1910 = vadd.f32 %v1890, %v1903
    %v1911 = vadd.f32 %v1892, %v1907
    %v1912 = vadd.f32 %v1894, %v1903
    %v1913 = vadd.f32 %v1896, %v1907
    %1914 = vst [vmem:[#allocation23] sm:$0xff] %v1910
    %1915 = vst [vmem:[#allocation23 + $0x8] sm:$0xff] %v1911
    %1916 = vst [vmem:[#allocation23 + $0x10] sm:$0xff] %v1912
    %1917 = vst [vmem:[#allocation23 + $0x18] sm:$0xff] %v1913
    // Predicated region
    $region106: #{tpu_custom_call.1} parent=1 // pred_check
      _
    $region107: #{tpu_custom_call.1} parent=1 // pred_check_branch
      %1919 = sbr.rel (0) target = $region109
    $region108: #{tpu_custom_call.1} parent=1 // pred_region
      %s1921 = ssub.s32 512, 512
      %1922 = vsyncadd [#allocation4], %s1921
      %s1923 = sshll.u32 [#allocation23], 4
      %s1924 = int_to_ptr.vmem [resolvable:$true] %s1923
      %1929 = dma.vmem_to_hbm [thread:$0]  %s1924, 512, %s13, [#allocation4], 256, 256, 16
    $region109: #{tpu_custom_call.1} parent=1 // pred_fallthru
      _
    // Predicated region
    $region110: #{tpu_custom_call.1} parent=1 // pred_check
      _
    $region111: #{tpu_custom_call.1} parent=1 // pred_check_branch
      %1931 = sbr.rel (0) target = $region113
    $region112: #{tpu_custom_call.1} parent=1 // pred_region
      %1932 = dma.done [#allocation4], 512
    $region113: #{tpu_custom_call.1} parent=1 // pred_fallthru
      _
    %1933 = vsyncpa [#allocation3], 1
    %1934 = vsyncpa [#allocation6], 1
    %1935 = vsyncpa [#allocation9], 1
    %1936 = vsyncpa [#allocation12], 1
    %1937 = vsyncpa [#allocation15], 1
    %1938 = vsyncpa [#allocation18], 1
    %1939 = vsyncpa [#allocation21], 1
    %1940 = vsyncpa [#allocation4], 1

</llo_original>
